<compile_context>
chip_gen: v5e
topology: v5e:2x2
jax: 0.10.0
libtpu: 0.0.40
codegen_flags: <defaults>
</compile_context>

<pallas_src>
import numpy as np
import jax
import jax.numpy as jnp
from jax.experimental import pallas as pl
from jax.experimental.pallas import tpu as pltpu


# ----------------------------------------------------------------------------
# Fused whole-network kernel (one image per grid step)
# ----------------------------------------------------------------------------
def _lenet5_kernel(x_ref, w1_ref, b1_ref, w2_ref, b2_ref, w3_ref, b3_ref,
                   w4_ref, b4_ref, w5_ref, b5_ref, o_ref):
    x = x_ref[0]          # (4, 8, 128) bf16 : [row % 4, row // 4, padded col]
    w1b = w1_ref[...]     # (640, 256) bf16 banded conv1 weights
    w2b = w2_ref[...]     # (640, 256) bf16 banded conv2 weights

    # ---- conv1 (5x5, pad=2) + bias + ReLU + 2x2/2 max-pool -----------------
    # lhs rows are grouped by conv-output-row residue r = y mod 4 (7 rows
    # each); residues (0,1)/(2,3) are the two members of each pool row pair.
    def conv1_lhs(r):
        slabs = [x[(r + ki) % 4, ((r + ki) // 4):((r + ki) // 4) + 7, :]
                 for ki in range(5)]                              # 5 x (7, 128)
        return jnp.concatenate(slabs, axis=-1)                    # (7, 640)

    lhs1 = jnp.concatenate([conv1_lhs(r) for r in range(4)], axis=0)   # (28,640)
    cr = jnp.dot(lhs1, w1b, preferred_element_type=jnp.float32)        # (28,256)
    m_e = jnp.maximum(cr[0:7], cr[7:14])      # conv rows 4v,4v+1 -> h1 row 2v
    m_o = jnp.maximum(cr[14:21], cr[21:28])   # conv rows 4v+2,4v+3 -> h1 row 2v+1
    b1t = b1_ref[...]                         # (1, 128) f32, bias tiled over x//2
    # column pooling: max of the two 128-lane x-parity halves; then bias+ReLU.
    h1_e = jnp.maximum(jnp.maximum(m_e[:, :128], m_e[:, 128:]) + b1t, 0.0)
    h1_o = jnp.maximum(jnp.maximum(m_o[:, :128], m_o[:, 128:]) + b1t, 0.0)
    h1 = (h1_e.astype(jnp.bfloat16), h1_o.astype(jnp.bfloat16))   # (7,128) each

    # ---- conv2 (5x5) + bias + ReLU + 2x2/2 max-pool -------------------------
    def conv2_lhs(qy):
        slabs = [h1[(qy + ki) % 2][((qy + ki) // 2):((qy + ki) // 2) + 5, :]
                 for ki in range(5)]                              # 5 x (5, 128)
        return jnp.concatenate(slabs, axis=-1)                    # (5, 640)

    lhs2 = jnp.concatenate([conv2_lhs(0), conv2_lhs(1)], axis=0)  # (10, 640)
    cq = jnp.dot(lhs2, w2b, preferred_element_type=jnp.float32)   # (10, 256)
    mq = jnp.maximum(cq[0:5], cq[5:10])                           # row pooling
    b2t = b2_ref[...]                                             # (1, 128) f32
    h2 = jnp.maximum(jnp.maximum(mq[:, :128], mq[:, 128:]) + b2t, 0.0)
    h2 = h2.astype(jnp.bfloat16)        # (5, 128): rows=y, lanes=(x*16+c), padded

    # ---- conv3 (5x5 input, 5x5 kernel -> matmul) + fc1 + fc2 + log_softmax --
    feat = jnp.concatenate([h2[v:v + 1, :] for v in range(5)], axis=-1)  # (1,640)
    z = jnp.dot(feat, w3_ref[...], preferred_element_type=jnp.float32) + b3_ref[...]
    z = jnp.maximum(z, 0.0).astype(jnp.bfloat16)                         # (1,120)
    z = jnp.dot(z, w4_ref[...], preferred_element_type=jnp.float32) + b4_ref[...]
    z = jnp.maximum(z, 0.0).astype(jnp.bfloat16)                         # (1, 84)
    z = jnp.dot(z, w5_ref[...], preferred_element_type=jnp.float32) + b5_ref[...]
    z = z - jnp.max(z, axis=-1, keepdims=True)                           # (1, 10)
    lse = jnp.log(jnp.sum(jnp.exp(z), axis=-1, keepdims=True))
    o_ref[0] = (z - lse).astype(o_ref.dtype)


# ----------------------------------------------------------------------------
# pallas_call wrapper
# ----------------------------------------------------------------------------
def _full(shape):
    n = len(shape)
    return pl.BlockSpec(shape, lambda i: (0,) * n)


def lenet5_pallas(xr4, pp):
    B = xr4.shape[0]
    flops_per_img = 2 * (28 * 640 * 256 + 10 * 640 * 256
                         + 640 * 120 + 120 * 84 + 84 * 10)
    weight_bytes = sum(int(np.prod(v.shape)) * v.dtype.itemsize
                       for v in pp.values())
    out = pl.pallas_call(
        _lenet5_kernel,
        out_shape=jax.ShapeDtypeStruct((B, 1, 10), jnp.float32),
        grid=(B,),
        in_specs=[
            pl.BlockSpec((1, 4, 8, 128), lambda i: (i, 0, 0, 0)),
            _full((640, 256)), _full((1, 128)),       # conv1 band weights / bias
            _full((640, 256)), _full((1, 128)),       # conv2 band weights / bias
            _full((640, 120)), _full((1, 120)),       # conv3 matmul weights / bias
            _full((120, 84)),  _full((1, 84)),        # fc1
            _full((84, 10)),   _full((1, 10)),        # fc2
        ],
        out_specs=pl.BlockSpec((1, 1, 10), lambda i: (i, 0, 0)),
        compiler_params=pltpu.CompilerParams(
            dimension_semantics=("parallel",),
            vmem_limit_bytes=32 * 1024 * 1024),
        cost_estimate=pl.CostEstimate(
            flops=flops_per_img * B,
            transcendentals=11 * B,
            bytes_accessed=int(xr4.size) * 2 + weight_bytes + B * 40),
    )(xr4, pp["w1b"], pp["b1t"], pp["w2b"], pp["b2t"], pp["w3m"], pp["b3"],
      pp["w4"], pp["b4"], pp["w5"], pp["b5"])
    return out.reshape(B, 10)


@jax.jit
def lenet5_forward(x_nchw, pp):
    """x_nchw: (B, 1, 28, 28) f32.  Returns (B, 10) f32 log-probabilities."""
    B = x_nchw.shape[0]
    x = x_nchw.reshape(B, 28, 28)
    # pad=2 on both spatial dims, then pad lanes 32 -> 128 (zero weight cols).
    xpad = jnp.pad(x, ((0, 0), (2, 2), (2, 2 + 96)))          # (B, 32, 128)
    # split rows by (row mod 4) so all in-kernel row accesses are contiguous.
    xr4 = xpad.reshape(B, 8, 4, 128).transpose(0, 2, 1, 3).astype(jnp.bfloat16)
    return lenet5_pallas(xr4, pp)                             # (B, 10)


# ----------------------------------------------------------------------------
# Parameters + banded-weight preparation (one-time XLA glue on tiny arrays)
# ----------------------------------------------------------------------------
def init_params():
    keys = jax.random.split(jax.random.PRNGKey(0), 10)
    s = 0.1
    return {
        "w1": s * jax.random.normal(keys[0], (6, 1, 5, 5), jnp.float32),
        "b1": s * jax.random.normal(keys[1], (6,), jnp.float32),
        "w2": s * jax.random.normal(keys[2], (16, 6, 5, 5), jnp.float32),
        "b2": s * jax.random.normal(keys[3], (16,), jnp.float32),
        "w3": s * jax.random.normal(keys[4], (120, 16, 5, 5), jnp.float32),
        "b3": s * jax.random.normal(keys[5], (120,), jnp.float32),
        "fc1_w": s * jax.random.normal(keys[6], (120, 84), jnp.float32),
        "fc1_b": s * jax.random.normal(keys[7], (84,), jnp.float32),
        "fc2_w": s * jax.random.normal(keys[8], (84, 10), jnp.float32),
        "fc2_b": s * jax.random.normal(keys[9], (10,), jnp.float32),
    }


def prepare_params(p):
    f32, bf16 = jnp.float32, jnp.bfloat16

    # conv1 banded weights: rows = ki*128 + x_in (x_in < 32),
    # cols = x_parity*128 + (x//2)*6 + c_out.
    KI, XIN, PXJ, OX, C = np.meshgrid(np.arange(5), np.arange(32), np.arange(2),
                                      np.arange(14), np.arange(6), indexing="ij")
    KJ = XIN - (2 * OX + PXJ)
    v1 = jnp.where((KJ >= 0) & (KJ <= 4),
                   p["w1"][C, 0, KI, np.clip(KJ, 0, 4)], 0.0)   # (5,32,2,14,6)
    w1b = jnp.pad(v1.reshape(5, 32, 2, 84),
                  ((0, 0), (0, 96), (0, 0), (0, 44))).reshape(640, 256)

    # conv2 banded weights: rows = ki*128 + (x*6 + c_in),
    # cols = x_parity*128 + (x//2)*16 + c_out.
    KI, OX, C, PX, U, C2 = np.meshgrid(np.arange(5), np.arange(14), np.arange(6),
                                       np.arange(2), np.arange(5), np.arange(16),
                                       indexing="ij")
    KJ = OX - (2 * U + PX)
    v2 = jnp.where((KJ >= 0) & (KJ <= 4),
                   p["w2"][C2, C, KI, np.clip(KJ, 0, 4)], 0.0)  # (5,14,6,2,5,16)
    w2b = jnp.pad(v2.reshape(5, 84, 2, 80),
                  ((0, 0), (0, 44), (0, 0), (0, 48))).reshape(640, 256)

    # conv3 as a matmul on the (y, x, c) flattened 5x5x16 activation; the
    # (x, c) lanes are padded 80 -> 128 to match the kernel's h2 layout.
    w3m = jnp.pad(jnp.transpose(p["w3"], (2, 3, 1, 0)).reshape(5, 80, 120),
                  ((0, 0), (0, 48), (0, 0))).reshape(640, 120)

    def bias_tile(b, reps, pad):
        return jnp.pad(jnp.tile(b, reps), (0, pad)).reshape(1, -1).astype(f32)

    return {
        "w1b": w1b.astype(bf16), "b1t": bias_tile(p["b1"], 14, 44),
        "w2b": w2b.astype(bf16), "b2t": bias_tile(p["b2"], 5, 48),
        "w3m": w3m.astype(bf16), "b3": p["b3"].reshape(1, -1).astype(f32),
        "w4": p["fc1_w"].astype(bf16), "b4": p["fc1_b"].reshape(1, -1).astype(f32),
        "w5": p["fc2_w"].astype(bf16), "b5": p["fc2_b"].reshape(1, -1).astype(f32),
    }


# ----------------------------------------------------------------------------
# Pure-JAX reference (f32) for a sanity check
# ----------------------------------------------------------------------------
def reference_forward(x, p):
    dn = ("NCHW", "OIHW", "NCHW")
    h = jax.lax.conv_general_dilated(x, p["w1"], (1, 1), ((2, 2), (2, 2)),
                                     dimension_numbers=dn)
    h = jax.nn.relu(h + p["b1"].reshape(1, -1, 1, 1))
    h = jax.lax.reduce_window(h, -jnp.inf, jax.lax.max,
                              (1, 1, 2, 2), (1, 1, 2, 2), "VALID")
    h = jax.lax.conv_general_dilated(h, p["w2"], (1, 1), "VALID",
                                     dimension_numbers=dn)
    h = jax.nn.relu(h + p["b2"].reshape(1, -1, 1, 1))
    h = jax.lax.reduce_window(h, -jnp.inf, jax.lax.max,
                              (1, 1, 2, 2), (1, 1, 2, 2), "VALID")
    h = jax.lax.conv_general_dilated(h, p["w3"], (1, 1), "VALID",
                                     dimension_numbers=dn)
    h = jax.nn.relu(h + p["b3"].reshape(1, -1, 1, 1)).reshape(x.shape[0], 120)
    h = jax.nn.relu(h @ p["fc1_w"] + p["fc1_b"])
    h = h @ p["fc2_w"] + p["fc2_b"]
    return jax.nn.log_softmax(h, axis=-1)


if __name__ == "__main__":
    # 28x28 single-channel input is required by the architecture
    # (conv3 reduces 5x5 -> 1x1 so that view(-1, 120) is valid).
    x = jax.random.normal(jax.random.PRNGKey(0), (2, 1, 28, 28), jnp.float32)
    params = init_params()
    pp = prepare_params(params)

    out = jax.block_until_ready(lenet5_forward(x, pp))
    assert out.shape == (2, 10)

    ref = reference_forward(x, params)
    err = float(jnp.max(jnp.abs(out - ref)))
    assert err < 0.2, f"max |kernel - reference| = {err}"
    print("KERNEL_OK")
</pallas_src>

<mosaic_0001>
module attributes {stable_mosaic.version = 11 : i64} {
  func.func @_lenet5_kernel(%arg0: i32, %arg1: memref<1x4x8x128xbf16, #tpu.memory_space<vmem>>, %arg2: memref<640x256xbf16, #tpu.memory_space<vmem>>, %arg3: memref<1x128xf32, #tpu.memory_space<vmem>>, %arg4: memref<640x256xbf16, #tpu.memory_space<vmem>>, %arg5: memref<1x128xf32, #tpu.memory_space<vmem>>, %arg6: memref<640x120xbf16, #tpu.memory_space<vmem>>, %arg7: memref<1x120xf32, #tpu.memory_space<vmem>>, %arg8: memref<120x84xbf16, #tpu.memory_space<vmem>>, %arg9: memref<1x84xf32, #tpu.memory_space<vmem>>, %arg10: memref<84x10xbf16, #tpu.memory_space<vmem>>, %arg11: memref<1x10xf32, #tpu.memory_space<vmem>>, %arg12: memref<1x1x10xf32, #tpu.memory_space<vmem>>) attributes {dimension_semantics = [#tpu.dimension_semantics<parallel>], iteration_bounds = array<i64: 2>, scalar_prefetch = 0 : i64, scratch_operands = 0 : i64, tpu.core_type = #tpu.core_type<tc>, window_params = [{transform_indices = @transform_0, window_bounds = array<i64: 1, 4, 8, 128>}, {pipeline_mode = #tpu.pipeline_mode<synchronous>, transform_indices = @transform_1, window_bounds = array<i64: 640, 256>}, {pipeline_mode = #tpu.pipeline_mode<synchronous>, transform_indices = @transform_2, window_bounds = array<i64: 1, 128>}, {pipeline_mode = #tpu.pipeline_mode<synchronous>, transform_indices = @transform_3, window_bounds = array<i64: 640, 256>}, {pipeline_mode = #tpu.pipeline_mode<synchronous>, transform_indices = @transform_4, window_bounds = array<i64: 1, 128>}, {pipeline_mode = #tpu.pipeline_mode<synchronous>, transform_indices = @transform_5, window_bounds = array<i64: 640, 120>}, {pipeline_mode = #tpu.pipeline_mode<synchronous>, transform_indices = @transform_6, window_bounds = array<i64: 1, 120>}, {pipeline_mode = #tpu.pipeline_mode<synchronous>, transform_indices = @transform_7, window_bounds = array<i64: 120, 84>}, {pipeline_mode = #tpu.pipeline_mode<synchronous>, transform_indices = @transform_8, window_bounds = array<i64: 1, 84>}, {pipeline_mode = #tpu.pipeline_mode<synchronous>, transform_indices = @transform_9, window_bounds = array<i64: 84, 10>}, {pipeline_mode = #tpu.pipeline_mode<synchronous>, transform_indices = @transform_10, window_bounds = array<i64: 1, 10>}, {transform_indices = @transform_11, window_bounds = array<i64: 1, 1, 10>}]} {
    %c0 = arith.constant 0 : index
    %c0_0 = arith.constant 0 : index
    %c0_1 = arith.constant 0 : index
    %c0_2 = arith.constant 0 : index
    %0 = vector.load %arg1[%c0, %c0_0, %c0_1, %c0_2] : memref<1x4x8x128xbf16, #tpu.memory_space<vmem>>, vector<1x4x8x128xbf16>
    %1 = vector.shape_cast %0 : vector<1x4x8x128xbf16> to vector<4x8x128xbf16>
    %c0_3 = arith.constant 0 : index
    %c0_4 = arith.constant 0 : index
    %2 = vector.load %arg2[%c0_3, %c0_4] : memref<640x256xbf16, #tpu.memory_space<vmem>>, vector<640x256xbf16>
    %c0_5 = arith.constant 0 : index
    %c0_6 = arith.constant 0 : index
    %3 = vector.load %arg4[%c0_5, %c0_6] : memref<640x256xbf16, #tpu.memory_space<vmem>>, vector<640x256xbf16>
    %4 = vector.extract_strided_slice %1 {offsets = [0, 0, 0], sizes = [1, 7, 128], strides = [1, 1, 1]} : vector<4x8x128xbf16> to vector<1x7x128xbf16>
    %5 = vector.shape_cast %4 : vector<1x7x128xbf16> to vector<7x128xbf16>
    %6 = vector.extract_strided_slice %1 {offsets = [1, 0, 0], sizes = [1, 7, 128], strides = [1, 1, 1]} : vector<4x8x128xbf16> to vector<1x7x128xbf16>
    %7 = vector.shape_cast %6 : vector<1x7x128xbf16> to vector<7x128xbf16>
    %8 = vector.extract_strided_slice %1 {offsets = [2, 0, 0], sizes = [1, 7, 128], strides = [1, 1, 1]} : vector<4x8x128xbf16> to vector<1x7x128xbf16>
    %9 = vector.shape_cast %8 : vector<1x7x128xbf16> to vector<7x128xbf16>
    %10 = vector.extract_strided_slice %1 {offsets = [3, 0, 0], sizes = [1, 7, 128], strides = [1, 1, 1]} : vector<4x8x128xbf16> to vector<1x7x128xbf16>
    %11 = vector.shape_cast %10 : vector<1x7x128xbf16> to vector<7x128xbf16>
    %12 = vector.extract_strided_slice %1 {offsets = [0, 1, 0], sizes = [1, 7, 128], strides = [1, 1, 1]} : vector<4x8x128xbf16> to vector<1x7x128xbf16>
    %13 = vector.shape_cast %12 : vector<1x7x128xbf16> to vector<7x128xbf16>
    %14 = tpu.concatenate %5, %7, %9, %11, %13 in 1 : vector<7x128xbf16>, vector<7x128xbf16>, vector<7x128xbf16>, vector<7x128xbf16>, vector<7x128xbf16> -> vector<7x640xbf16>
    %15 = vector.extract_strided_slice %1 {offsets = [1, 0, 0], sizes = [1, 7, 128], strides = [1, 1, 1]} : vector<4x8x128xbf16> to vector<1x7x128xbf16>
    %16 = vector.shape_cast %15 : vector<1x7x128xbf16> to vector<7x128xbf16>
    %17 = vector.extract_strided_slice %1 {offsets = [2, 0, 0], sizes = [1, 7, 128], strides = [1, 1, 1]} : vector<4x8x128xbf16> to vector<1x7x128xbf16>
    %18 = vector.shape_cast %17 : vector<1x7x128xbf16> to vector<7x128xbf16>
    %19 = vector.extract_strided_slice %1 {offsets = [3, 0, 0], sizes = [1, 7, 128], strides = [1, 1, 1]} : vector<4x8x128xbf16> to vector<1x7x128xbf16>
    %20 = vector.shape_cast %19 : vector<1x7x128xbf16> to vector<7x128xbf16>
    %21 = vector.extract_strided_slice %1 {offsets = [0, 1, 0], sizes = [1, 7, 128], strides = [1, 1, 1]} : vector<4x8x128xbf16> to vector<1x7x128xbf16>
    %22 = vector.shape_cast %21 : vector<1x7x128xbf16> to vector<7x128xbf16>
    %23 = vector.extract_strided_slice %1 {offsets = [1, 1, 0], sizes = [1, 7, 128], strides = [1, 1, 1]} : vector<4x8x128xbf16> to vector<1x7x128xbf16>
    %24 = vector.shape_cast %23 : vector<1x7x128xbf16> to vector<7x128xbf16>
    %25 = tpu.concatenate %16, %18, %20, %22, %24 in 1 : vector<7x128xbf16>, vector<7x128xbf16>, vector<7x128xbf16>, vector<7x128xbf16>, vector<7x128xbf16> -> vector<7x640xbf16>
    %26 = vector.extract_strided_slice %1 {offsets = [2, 0, 0], sizes = [1, 7, 128], strides = [1, 1, 1]} : vector<4x8x128xbf16> to vector<1x7x128xbf16>
    %27 = vector.shape_cast %26 : vector<1x7x128xbf16> to vector<7x128xbf16>
    %28 = vector.extract_strided_slice %1 {offsets = [3, 0, 0], sizes = [1, 7, 128], strides = [1, 1, 1]} : vector<4x8x128xbf16> to vector<1x7x128xbf16>
    %29 = vector.shape_cast %28 : vector<1x7x128xbf16> to vector<7x128xbf16>
    %30 = vector.extract_strided_slice %1 {offsets = [0, 1, 0], sizes = [1, 7, 128], strides = [1, 1, 1]} : vector<4x8x128xbf16> to vector<1x7x128xbf16>
    %31 = vector.shape_cast %30 : vector<1x7x128xbf16> to vector<7x128xbf16>
    %32 = vector.extract_strided_slice %1 {offsets = [1, 1, 0], sizes = [1, 7, 128], strides = [1, 1, 1]} : vector<4x8x128xbf16> to vector<1x7x128xbf16>
    %33 = vector.shape_cast %32 : vector<1x7x128xbf16> to vector<7x128xbf16>
    %34 = vector.extract_strided_slice %1 {offsets = [2, 1, 0], sizes = [1, 7, 128], strides = [1, 1, 1]} : vector<4x8x128xbf16> to vector<1x7x128xbf16>
    %35 = vector.shape_cast %34 : vector<1x7x128xbf16> to vector<7x128xbf16>
    %36 = tpu.concatenate %27, %29, %31, %33, %35 in 1 : vector<7x128xbf16>, vector<7x128xbf16>, vector<7x128xbf16>, vector<7x128xbf16>, vector<7x128xbf16> -> vector<7x640xbf16>
    %37 = vector.extract_strided_slice %1 {offsets = [3, 0, 0], sizes = [1, 7, 128], strides = [1, 1, 1]} : vector<4x8x128xbf16> to vector<1x7x128xbf16>
    %38 = vector.shape_cast %37 : vector<1x7x128xbf16> to vector<7x128xbf16>
    %39 = vector.extract_strided_slice %1 {offsets = [0, 1, 0], sizes = [1, 7, 128], strides = [1, 1, 1]} : vector<4x8x128xbf16> to vector<1x7x128xbf16>
    %40 = vector.shape_cast %39 : vector<1x7x128xbf16> to vector<7x128xbf16>
    %41 = vector.extract_strided_slice %1 {offsets = [1, 1, 0], sizes = [1, 7, 128], strides = [1, 1, 1]} : vector<4x8x128xbf16> to vector<1x7x128xbf16>
    %42 = vector.shape_cast %41 : vector<1x7x128xbf16> to vector<7x128xbf16>
    %43 = vector.extract_strided_slice %1 {offsets = [2, 1, 0], sizes = [1, 7, 128], strides = [1, 1, 1]} : vector<4x8x128xbf16> to vector<1x7x128xbf16>
    %44 = vector.shape_cast %43 : vector<1x7x128xbf16> to vector<7x128xbf16>
    %45 = vector.extract_strided_slice %1 {offsets = [3, 1, 0], sizes = [1, 7, 128], strides = [1, 1, 1]} : vector<4x8x128xbf16> to vector<1x7x128xbf16>
    %46 = vector.shape_cast %45 : vector<1x7x128xbf16> to vector<7x128xbf16>
    %47 = tpu.concatenate %38, %40, %42, %44, %46 in 1 : vector<7x128xbf16>, vector<7x128xbf16>, vector<7x128xbf16>, vector<7x128xbf16>, vector<7x128xbf16> -> vector<7x640xbf16>
    %48 = tpu.concatenate %14, %25, %36, %47 in 0 : vector<7x640xbf16>, vector<7x640xbf16>, vector<7x640xbf16>, vector<7x640xbf16> -> vector<28x640xbf16>
    %cst = arith.constant dense<0.000000e+00> : vector<28x256xf32>
    %49 = tpu.matmul %48, %2, %cst {dimension_numbers = #tpu.dot_dimension_numbers<[1], [0], [0], [1], [0, 0, 1, 1], [], []>} : vector<28x640xbf16>, vector<640x256xbf16>, vector<28x256xf32> -> vector<28x256xf32>
    %50 = vector.extract_strided_slice %49 {offsets = [0, 0], sizes = [7, 256], strides = [1, 1]} : vector<28x256xf32> to vector<7x256xf32>
    %51 = vector.extract_strided_slice %49 {offsets = [7, 0], sizes = [7, 256], strides = [1, 1]} : vector<28x256xf32> to vector<7x256xf32>
    %52 = arith.maximumf %50, %51 : vector<7x256xf32>
    %53 = vector.extract_strided_slice %49 {offsets = [14, 0], sizes = [7, 256], strides = [1, 1]} : vector<28x256xf32> to vector<7x256xf32>
    %54 = vector.extract_strided_slice %49 {offsets = [21, 0], sizes = [7, 256], strides = [1, 1]} : vector<28x256xf32> to vector<7x256xf32>
    %55 = arith.maximumf %53, %54 : vector<7x256xf32>
    %c0_7 = arith.constant 0 : index
    %c0_8 = arith.constant 0 : index
    %56 = vector.load %arg3[%c0_7, %c0_8] : memref<1x128xf32, #tpu.memory_space<vmem>>, vector<1x128xf32>
    %57 = vector.extract_strided_slice %52 {offsets = [0, 0], sizes = [7, 128], strides = [1, 1]} : vector<7x256xf32> to vector<7x128xf32>
    %58 = vector.extract_strided_slice %52 {offsets = [0, 128], sizes = [7, 128], strides = [1, 1]} : vector<7x256xf32> to vector<7x128xf32>
    %59 = arith.maximumf %57, %58 : vector<7x128xf32>
    %60 = vector.broadcast %56 : vector<1x128xf32> to vector<7x128xf32>
    %61 = arith.addf %59, %60 : vector<7x128xf32>
    %cst_9 = arith.constant 0.000000e+00 : f32
    %62 = vector.broadcast %cst_9 : f32 to vector<7x128xf32>
    %63 = arith.maximumf %61, %62 : vector<7x128xf32>
    %64 = vector.extract_strided_slice %55 {offsets = [0, 0], sizes = [7, 128], strides = [1, 1]} : vector<7x256xf32> to vector<7x128xf32>
    %65 = vector.extract_strided_slice %55 {offsets = [0, 128], sizes = [7, 128], strides = [1, 1]} : vector<7x256xf32> to vector<7x128xf32>
    %66 = arith.maximumf %64, %65 : vector<7x128xf32>
    %67 = vector.broadcast %56 : vector<1x128xf32> to vector<7x128xf32>
    %68 = arith.addf %66, %67 : vector<7x128xf32>
    %cst_10 = arith.constant 0.000000e+00 : f32
    %69 = vector.broadcast %cst_10 : f32 to vector<7x128xf32>
    %70 = arith.maximumf %68, %69 : vector<7x128xf32>
    %71 = arith.truncf %63 : vector<7x128xf32> to vector<7x128xbf16>
    %72 = arith.truncf %70 : vector<7x128xf32> to vector<7x128xbf16>
    %73 = vector.extract_strided_slice %71 {offsets = [0, 0], sizes = [5, 128], strides = [1, 1]} : vector<7x128xbf16> to vector<5x128xbf16>
    %74 = vector.extract_strided_slice %72 {offsets = [0, 0], sizes = [5, 128], strides = [1, 1]} : vector<7x128xbf16> to vector<5x128xbf16>
    %75 = vector.extract_strided_slice %71 {offsets = [1, 0], sizes = [5, 128], strides = [1, 1]} : vector<7x128xbf16> to vector<5x128xbf16>
    %76 = vector.extract_strided_slice %72 {offsets = [1, 0], sizes = [5, 128], strides = [1, 1]} : vector<7x128xbf16> to vector<5x128xbf16>
    %77 = vector.extract_strided_slice %71 {offsets = [2, 0], sizes = [5, 128], strides = [1, 1]} : vector<7x128xbf16> to vector<5x128xbf16>
    %78 = tpu.concatenate %73, %74, %75, %76, %77 in 1 : vector<5x128xbf16>, vector<5x128xbf16>, vector<5x128xbf16>, vector<5x128xbf16>, vector<5x128xbf16> -> vector<5x640xbf16>
    %79 = vector.extract_strided_slice %72 {offsets = [0, 0], sizes = [5, 128], strides = [1, 1]} : vector<7x128xbf16> to vector<5x128xbf16>
    %80 = vector.extract_strided_slice %71 {offsets = [1, 0], sizes = [5, 128], strides = [1, 1]} : vector<7x128xbf16> to vector<5x128xbf16>
    %81 = vector.extract_strided_slice %72 {offsets = [1, 0], sizes = [5, 128], strides = [1, 1]} : vector<7x128xbf16> to vector<5x128xbf16>
    %82 = vector.extract_strided_slice %71 {offsets = [2, 0], sizes = [5, 128], strides = [1, 1]} : vector<7x128xbf16> to vector<5x128xbf16>
    %83 = vector.extract_strided_slice %72 {offsets = [2, 0], sizes = [5, 128], strides = [1, 1]} : vector<7x128xbf16> to vector<5x128xbf16>
    %84 = tpu.concatenate %79, %80, %81, %82, %83 in 1 : vector<5x128xbf16>, vector<5x128xbf16>, vector<5x128xbf16>, vector<5x128xbf16>, vector<5x128xbf16> -> vector<5x640xbf16>
    %85 = tpu.concatenate %78, %84 in 0 : vector<5x640xbf16>, vector<5x640xbf16> -> vector<10x640xbf16>
    %cst_11 = arith.constant dense<0.000000e+00> : vector<10x256xf32>
    %86 = tpu.matmul %85, %3, %cst_11 {dimension_numbers = #tpu.dot_dimension_numbers<[1], [0], [0], [1], [0, 0, 1, 1], [], []>} : vector<10x640xbf16>, vector<640x256xbf16>, vector<10x256xf32> -> vector<10x256xf32>
    %87 = vector.extract_strided_slice %86 {offsets = [0, 0], sizes = [5, 256], strides = [1, 1]} : vector<10x256xf32> to vector<5x256xf32>
    %88 = vector.extract_strided_slice %86 {offsets = [5, 0], sizes = [5, 256], strides = [1, 1]} : vector<10x256xf32> to vector<5x256xf32>
    %89 = arith.maximumf %87, %88 : vector<5x256xf32>
    %c0_12 = arith.constant 0 : index
    %c0_13 = arith.constant 0 : index
    %90 = vector.load %arg5[%c0_12, %c0_13] : memref<1x128xf32, #tpu.memory_space<vmem>>, vector<1x128xf32>
    %91 = vector.extract_strided_slice %89 {offsets = [0, 0], sizes = [5, 128], strides = [1, 1]} : vector<5x256xf32> to vector<5x128xf32>
    %92 = vector.extract_strided_slice %89 {offsets = [0, 128], sizes = [5, 128], strides = [1, 1]} : vector<5x256xf32> to vector<5x128xf32>
    %93 = arith.maximumf %91, %92 : vector<5x128xf32>
    %94 = vector.broadcast %90 : vector<1x128xf32> to vector<5x128xf32>
    %95 = arith.addf %93, %94 : vector<5x128xf32>
    %cst_14 = arith.constant 0.000000e+00 : f32
    %96 = vector.broadcast %cst_14 : f32 to vector<5x128xf32>
    %97 = arith.maximumf %95, %96 : vector<5x128xf32>
    %98 = arith.truncf %97 : vector<5x128xf32> to vector<5x128xbf16>
    %99 = vector.extract_strided_slice %98 {offsets = [0, 0], sizes = [1, 128], strides = [1, 1]} : vector<5x128xbf16> to vector<1x128xbf16>
    %100 = vector.extract_strided_slice %98 {offsets = [1, 0], sizes = [1, 128], strides = [1, 1]} : vector<5x128xbf16> to vector<1x128xbf16>
    %101 = vector.extract_strided_slice %98 {offsets = [2, 0], sizes = [1, 128], strides = [1, 1]} : vector<5x128xbf16> to vector<1x128xbf16>
    %102 = vector.extract_strided_slice %98 {offsets = [3, 0], sizes = [1, 128], strides = [1, 1]} : vector<5x128xbf16> to vector<1x128xbf16>
    %103 = vector.extract_strided_slice %98 {offsets = [4, 0], sizes = [1, 128], strides = [1, 1]} : vector<5x128xbf16> to vector<1x128xbf16>
    %104 = tpu.concatenate %99, %100, %101, %102, %103 in 1 : vector<1x128xbf16>, vector<1x128xbf16>, vector<1x128xbf16>, vector<1x128xbf16>, vector<1x128xbf16> -> vector<1x640xbf16>
    %c0_15 = arith.constant 0 : index
    %c0_16 = arith.constant 0 : index
    %105 = vector.load %arg6[%c0_15, %c0_16] : memref<640x120xbf16, #tpu.memory_space<vmem>>, vector<640x120xbf16>
    %cst_17 = arith.constant dense<0.000000e+00> : vector<1x120xf32>
    %106 = tpu.matmul %104, %105, %cst_17 {dimension_numbers = #tpu.dot_dimension_numbers<[1], [0], [0], [1], [0, 0, 1, 1], [], []>} : vector<1x640xbf16>, vector<640x120xbf16>, vector<1x120xf32> -> vector<1x120xf32>
    %c0_18 = arith.constant 0 : index
    %c0_19 = arith.constant 0 : index
    %107 = vector.load %arg7[%c0_18, %c0_19] : memref<1x120xf32, #tpu.memory_space<vmem>>, vector<1x120xf32>
    %108 = arith.addf %106, %107 : vector<1x120xf32>
    %cst_20 = arith.constant 0.000000e+00 : f32
    %109 = vector.broadcast %cst_20 : f32 to vector<1x120xf32>
    %110 = arith.maximumf %108, %109 : vector<1x120xf32>
    %111 = arith.truncf %110 : vector<1x120xf32> to vector<1x120xbf16>
    %c0_21 = arith.constant 0 : index
    %c0_22 = arith.constant 0 : index
    %112 = vector.load %arg8[%c0_21, %c0_22] : memref<120x84xbf16, #tpu.memory_space<vmem>>, vector<120x84xbf16>
    %cst_23 = arith.constant dense<0.000000e+00> : vector<1x84xf32>
    %113 = tpu.matmul %111, %112, %cst_23 {dimension_numbers = #tpu.dot_dimension_numbers<[1], [0], [0], [1], [0, 0, 1, 1], [], []>} : vector<1x120xbf16>, vector<120x84xbf16>, vector<1x84xf32> -> vector<1x84xf32>
    %c0_24 = arith.constant 0 : index
    %c0_25 = arith.constant 0 : index
    %114 = vector.load %arg9[%c0_24, %c0_25] : memref<1x84xf32, #tpu.memory_space<vmem>>, vector<1x84xf32>
    %115 = arith.addf %113, %114 : vector<1x84xf32>
    %cst_26 = arith.constant 0.000000e+00 : f32
    %116 = vector.broadcast %cst_26 : f32 to vector<1x84xf32>
    %117 = arith.maximumf %115, %116 : vector<1x84xf32>
    %118 = arith.truncf %117 : vector<1x84xf32> to vector<1x84xbf16>
    %c0_27 = arith.constant 0 : index
    %c0_28 = arith.constant 0 : index
    %119 = vector.load %arg10[%c0_27, %c0_28] : memref<84x10xbf16, #tpu.memory_space<vmem>>, vector<84x10xbf16>
    %cst_29 = arith.constant dense<0.000000e+00> : vector<1x10xf32>
    %120 = tpu.matmul %118, %119, %cst_29 {dimension_numbers = #tpu.dot_dimension_numbers<[1], [0], [0], [1], [0, 0, 1, 1], [], []>} : vector<1x84xbf16>, vector<84x10xbf16>, vector<1x10xf32> -> vector<1x10xf32>
    %c0_30 = arith.constant 0 : index
    %c0_31 = arith.constant 0 : index
    %121 = vector.load %arg11[%c0_30, %c0_31] : memref<1x10xf32, #tpu.memory_space<vmem>>, vector<1x10xf32>
    %122 = arith.addf %120, %121 : vector<1x10xf32>
    %cst_32 = arith.constant dense<0xFF800000> : vector<1xf32>
    %123 = vector.multi_reduction <maximumf>, %122, %cst_32 [1] : vector<1x10xf32> to vector<1xf32>
    %124 = vector.shape_cast %123 : vector<1xf32> to vector<1x1xf32>
    %125 = vector.broadcast %124 : vector<1x1xf32> to vector<1x10xf32>
    %126 = arith.subf %122, %125 : vector<1x10xf32>
    %127 = math.exp %126 : vector<1x10xf32>
    %cst_33 = arith.constant dense<0.000000e+00> : vector<1xf32>
    %128 = vector.multi_reduction <add>, %127, %cst_33 [1] : vector<1x10xf32> to vector<1xf32>
    %129 = vector.shape_cast %128 : vector<1xf32> to vector<1x1xf32>
    %130 = math.log %129 : vector<1x1xf32>
    %131 = vector.broadcast %130 : vector<1x1xf32> to vector<1x10xf32>
    %132 = arith.subf %126, %131 : vector<1x10xf32>
    %c0_34 = arith.constant 0 : index
    %c0_35 = arith.constant 0 : index
    %c0_36 = arith.constant 0 : index
    %133 = vector.load %arg12[%c0_34, %c0_35, %c0_36] : memref<1x1x10xf32, #tpu.memory_space<vmem>>, vector<1x1x10xf32>
    %134 = vector.shape_cast %133 : vector<1x1x10xf32> to vector<1x10xf32>
    %135 = vector.shape_cast %132 : vector<1x10xf32> to vector<1x1x10xf32>
    tpu.vector_store %arg12[%c0_34, %c0_35, %c0_36], %135 {strides = array<i32>} : memref<1x1x10xf32, #tpu.memory_space<vmem>>, vector<1x1x10xf32>,
    return
  }
  func.func @transform_0(%arg0: i32) -> (i32, i32, i32, i32) {
    %c0_i32 = arith.constant 0 : i32
    %c0_i32_0 = arith.constant 0 : i32
    %c0_i32_1 = arith.constant 0 : i32
    %c0_i32_2 = arith.constant 0 : i32
    return %arg0, %c0_i32, %c0_i32_0, %c0_i32_1 : i32, i32, i32, i32
  }
  func.func @transform_1(%arg0: i32) -> (i32, i32) {
    %c0_i32 = arith.constant 0 : i32
    %c0_i32_0 = arith.constant 0 : i32
    %c0_i32_1 = arith.constant 0 : i32
    return %c0_i32, %c0_i32_0 : i32, i32
  }
  func.func @transform_2(%arg0: i32) -> (i32, i32) {
    %c0_i32 = arith.constant 0 : i32
    %c0_i32_0 = arith.constant 0 : i32
    %c0_i32_1 = arith.constant 0 : i32
    return %c0_i32, %c0_i32_0 : i32, i32
  }
  func.func @transform_3(%arg0: i32) -> (i32, i32) {
    %c0_i32 = arith.constant 0 : i32
    %c0_i32_0 = arith.constant 0 : i32
    %c0_i32_1 = arith.constant 0 : i32
    return %c0_i32, %c0_i32_0 : i32, i32
  }
  func.func @transform_4(%arg0: i32) -> (i32, i32) {
    %c0_i32 = arith.constant 0 : i32
    %c0_i32_0 = arith.constant 0 : i32
    %c0_i32_1 = arith.constant 0 : i32
    return %c0_i32, %c0_i32_0 : i32, i32
  }
  func.func @transform_5(%arg0: i32) -> (i32, i32) {
    %c0_i32 = arith.constant 0 : i32
    %c0_i32_0 = arith.constant 0 : i32
    %c0_i32_1 = arith.constant 0 : i32
    return %c0_i32, %c0_i32_0 : i32, i32
  }
  func.func @transform_6(%arg0: i32) -> (i32, i32) {
    %c0_i32 = arith.constant 0 : i32
    %c0_i32_0 = arith.constant 0 : i32
    %c0_i32_1 = arith.constant 0 : i32
    return %c0_i32, %c0_i32_0 : i32, i32
  }
  func.func @transform_7(%arg0: i32) -> (i32, i32) {
    %c0_i32 = arith.constant 0 : i32
    %c0_i32_0 = arith.constant 0 : i32
    %c0_i32_1 = arith.constant 0 : i32
    return %c0_i32, %c0_i32_0 : i32, i32
  }
  func.func @transform_8(%arg0: i32) -> (i32, i32) {
    %c0_i32 = arith.constant 0 : i32
    %c0_i32_0 = arith.constant 0 : i32
    %c0_i32_1 = arith.constant 0 : i32
    return %c0_i32, %c0_i32_0 : i32, i32
  }
  func.func @transform_9(%arg0: i32) -> (i32, i32) {
    %c0_i32 = arith.constant 0 : i32
    %c0_i32_0 = arith.constant 0 : i32
    %c0_i32_1 = arith.constant 0 : i32
    return %c0_i32, %c0_i32_0 : i32, i32
  }
  func.func @transform_10(%arg0: i32) -> (i32, i32) {
    %c0_i32 = arith.constant 0 : i32
    %c0_i32_0 = arith.constant 0 : i32
    %c0_i32_1 = arith.constant 0 : i32
    return %c0_i32, %c0_i32_0 : i32, i32
  }
  func.func @transform_11(%arg0: i32) -> (i32, i32, i32) {
    %c0_i32 = arith.constant 0 : i32
    %c0_i32_0 = arith.constant 0 : i32
    %c0_i32_1 = arith.constant 0 : i32
    return %arg0, %c0_i32, %c0_i32_0 : i32, i32, i32
  }
}

</mosaic_0001>

<llo_original>
// kernel: lenet5_forward.1
$region0: #{lenet5_forward.1}
  #allocation0 [shape = 'u32[]', space=smem, size = 0x4, offset = 0x4, fixed_abs, tag = 'smem constant byte address 0x4 - core index']
  #allocation1 [shape = 'u32[72,128]{1,0:T(1,128)}', space=vmem, size = 0x9000, scoped, tag = 'internal scratch']
  %s0 = inlined_call_operand.vmem [shape: bf16[2,4,8,128], index: 0, kind: input, shape index: {}]
  %s1 = inlined_call_operand.vmem [shape: bf16[640,256], index: 1, kind: input, shape index: {}]
  %s2 = inlined_call_operand.vmem [shape: f32[1,128], index: 2, kind: input, shape index: {}]
  %s3 = inlined_call_operand.hbm [shape: bf16[640,256], index: 3, kind: input, shape index: {}]
  %s4 = inlined_call_operand.vmem [shape: f32[1,128], index: 4, kind: input, shape index: {}]
  %s5 = inlined_call_operand.vmem [shape: bf16[640,120], index: 5, kind: input, shape index: {}]
  %s6 = inlined_call_operand.vmem [shape: f32[1,120], index: 6, kind: input, shape index: {}]
  %s7 = inlined_call_operand.vmem [shape: bf16[120,84], index: 7, kind: input, shape index: {}]
  %s8 = inlined_call_operand.vmem [shape: f32[1,84], index: 8, kind: input, shape index: {}]
  %s9 = inlined_call_operand.vmem [shape: bf16[84,10], index: 9, kind: input, shape index: {}]
  %s10 = inlined_call_operand.vmem [shape: f32[1,10], index: 10, kind: input, shape index: {}]
  %s11 = inlined_call_operand.hbm [shape: f32[2,1,10], index: 11, kind: output, shape index: {}]
  %s12 = sld [smem:[#allocation0]]
  $region81: #{lenet5_forward.1} parent=0
    _
  %s14 = ssub.s32 1, %s12
  %s15 = scalar_select 0, %s14, %s12
  $region1: #{lenet5_forward.1} parent=0
    #allocation2 [shape = 'u8[327680]{0}', space=vmem, size = 0x50000, scoped, tag = 'input window, operand 3, single buffered']
    #allocation3 [shape = 's32[2]{0}', space=sflag, size = 0x8, scoped, tag = 'scoped memory for lenet5_forward.1']
    #allocation4 [shape = 's32[2]{0}', space=sflag, size = 0x8, scoped, tag = 'scoped memory for lenet5_forward.1']
    #allocation5 [shape = 'u8[1024]{0}', space=vmem, size = 0x400, scoped, tag = 'output window, operand 0']
    %16 = vsyncpa [#allocation3], 0
    %17 = vsyncpa [#allocation4], 0
    %s18 = scalar_lea.sflag [#allocation4], 1
    %19 = vsyncpa %s18, 0
    loop: start=0, step=1, limit=4
    $region2: #{lenet5_forward.1} parent=1 // loop_pre_header
      _
    $region3: #{lenet5_forward.1} parent=1 // loop_header
      %s21 = sphi 0, %s25
      %p22 = scmp.ge.s32.totalorder %s21, 4
      %s31 = sphi 0, %s33
      %s34 = sphi 0, %s31
      %s35 = sphi 0, %s34
      %s51 = sphi 0, %s35
      %s55 = sphi 0, %s55
      %s57 = sphi 0, %s55
      %s58 = sphi 0, %s57
      %s72 = sphi 0, %s58
      %s76 = sphi 0, %s76
      %s78 = sphi 0, %s76
      %s79 = sphi 0, %s78
      %s93 = sphi 0, %s79
      %s97 = sphi 0, %s97
      %s99 = sphi 0, %s97
      %s100 = sphi 0, %s99
      %s114 = sphi 0, %s100
      %s118 = sphi 0, %s118
      %s120 = sphi 0, %s118
      %s121 = sphi 0, %s120
      %s135 = sphi 0, %s121
      %s139 = sphi 0, %s139
      %s141 = sphi 0, %s139
      %s142 = sphi 0, %s141
      %s156 = sphi 0, %s142
      %s160 = sphi 0, %s160
      %s162 = sphi 0, %s160
      %s163 = sphi 0, %s162
      %s177 = sphi 0, %s163
      %s181 = sphi 0, %s181
      %s183 = sphi 0, %s181
      %s184 = sphi 0, %s183
      %s198 = sphi 0, %s184
      %s202 = sphi 0, %s202
      %s204 = sphi 0, %s202
      %s205 = sphi 0, %s204
      %s219 = sphi 0, %s205
      %s223 = sphi 0, %s223
      %s225 = sphi 0, %s223
      %s226 = sphi 0, %s225
      %s240 = sphi 0, %s226
      %s244 = sphi 0, %s244
      %s246 = sphi 0, %s244
      %s247 = sphi 0, %s246
      %s261 = sphi 0, %s247
      %s267 = sphi 0, %s269
      %s270 = sphi 0, %s267
      %s271 = sphi 0, %s270
      %s287 = sphi 0, %s271
    $region4: #{lenet5_forward.1} parent=1 // loop_header_branch
      %24 = sbr.rel (%p22) target = $region8
    $region5: #{lenet5_forward.1} parent=1 // loop_body
      %s26 = ssub.s32 %s21, 1
      %s27 = ssub.s32 %s21, 2
      %s28 = sadd.s32 %s21, 1
      %s29 = ssub.s32 %s21, %s28
      %p30 = scmp.eq.s32.totalorder %s29, 0
      %s32 = sadd.s32 %s31, 1
      %s33 = scalar_select %p30, %s31, %s32
      %p36 = pneg %p30
      %p37 = scmp.eq.s32.totalorder %s21, 1
      %p38 = por %p36, %p37
      %p39 = scmp.ne.s32.totalorder %s31, %s34
      %p40 = scmp.eq.s32.totalorder %s21, 0
      %p41 = por %p39, %p40
      %p42 = scmp.ne.s32.totalorder %s31, %s34
      %p43 = scmp.eq.s32.totalorder %s26, 1
      %p44 = por %p42, %p43
      %p45 = scmp.ne.s32.totalorder %s34, %s35
      %p46 = scmp.eq.s32.totalorder %s26, 0
      %p47 = por %p45, %p46
      %p48 = scmp.ne.s32.totalorder %s34, %s35
      %p49 = scmp.eq.s32.totalorder %s27, 1
      %p50 = por %p48, %p49
      %p52 = scmp.ne.s32.totalorder %s35, %s51
      %p53 = scmp.eq.s32.totalorder %s27, 0
      %p54 = por %p52, %p53
      %s56 = sadd.s32 %s55, 1
      %p59 = scmp.eq.s32.totalorder %s21, 1
      %p60 = scmp.ne.s32.totalorder %s55, %s57
      %p61 = scmp.eq.s32.totalorder %s21, 0
      %p62 = por %p60, %p61
      %p63 = scmp.ne.s32.totalorder %s55, %s57
      %p64 = scmp.eq.s32.totalorder %s26, 1
      %p65 = por %p63, %p64
      %p66 = scmp.ne.s32.totalorder %s57, %s58
      %p67 = scmp.eq.s32.totalorder %s26, 0
      %p68 = por %p66, %p67
      %p69 = scmp.ne.s32.totalorder %s57, %s58
      %p70 = scmp.eq.s32.totalorder %s27, 1
      %p71 = por %p69, %p70
      %p73 = scmp.ne.s32.totalorder %s58, %s72
      %p74 = scmp.eq.s32.totalorder %s27, 0
      %p75 = por %p73, %p74
      %s77 = sadd.s32 %s76, 1
      %p80 = scmp.eq.s32.totalorder %s21, 1
      %p81 = scmp.ne.s32.totalorder %s76, %s78
      %p82 = scmp.eq.s32.totalorder %s21, 0
      %p83 = por %p81, %p82
      %p84 = scmp.ne.s32.totalorder %s76, %s78
      %p85 = scmp.eq.s32.totalorder %s26, 1
      %p86 = por %p84, %p85
      %p87 = scmp.ne.s32.totalorder %s78, %s79
      %p88 = scmp.eq.s32.totalorder %s26, 0
      %p89 = por %p87, %p88
      %p90 = scmp.ne.s32.totalorder %s78, %s79
      %p91 = scmp.eq.s32.totalorder %s27, 1
      %p92 = por %p90, %p91
      %p94 = scmp.ne.s32.totalorder %s79, %s93
      %p95 = scmp.eq.s32.totalorder %s27, 0
      %p96 = por %p94, %p95
      %s98 = sadd.s32 %s97, 1
      %p101 = scmp.eq.s32.totalorder %s21, 1
      %p102 = scmp.ne.s32.totalorder %s97, %s99
      %p103 = scmp.eq.s32.totalorder %s21, 0
      %p104 = por %p102, %p103
      %p105 = scmp.ne.s32.totalorder %s97, %s99
      %p106 = scmp.eq.s32.totalorder %s26, 1
      %p107 = por %p105, %p106
      %p108 = scmp.ne.s32.totalorder %s99, %s100
      %p109 = scmp.eq.s32.totalorder %s26, 0
      %p110 = por %p108, %p109
      %p111 = scmp.ne.s32.totalorder %s99, %s100
      %p112 = scmp.eq.s32.totalorder %s27, 1
      %p113 = por %p111, %p112
      %p115 = scmp.ne.s32.totalorder %s100, %s114
      %p116 = scmp.eq.s32.totalorder %s27, 0
      %p117 = por %p115, %p116
      %s119 = sadd.s32 %s118, 1
      %p122 = scmp.eq.s32.totalorder %s21, 1
      %p123 = scmp.ne.s32.totalorder %s118, %s120
      %p124 = scmp.eq.s32.totalorder %s21, 0
      %p125 = por %p123, %p124
      %p126 = scmp.ne.s32.totalorder %s118, %s120
      %p127 = scmp.eq.s32.totalorder %s26, 1
      %p128 = por %p126, %p127
      %p129 = scmp.ne.s32.totalorder %s120, %s121
      %p130 = scmp.eq.s32.totalorder %s26, 0
      %p131 = por %p129, %p130
      %p132 = scmp.ne.s32.totalorder %s120, %s121
      %p133 = scmp.eq.s32.totalorder %s27, 1
      %p134 = por %p132, %p133
      %p136 = scmp.ne.s32.totalorder %s121, %s135
      %p137 = scmp.eq.s32.totalorder %s27, 0
      %p138 = por %p136, %p137
      %s140 = sadd.s32 %s139, 1
      %p143 = scmp.eq.s32.totalorder %s21, 1
      %p144 = scmp.ne.s32.totalorder %s139, %s141
      %p145 = scmp.eq.s32.totalorder %s21, 0
      %p146 = por %p144, %p145
      %p147 = scmp.ne.s32.totalorder %s139, %s141
      %p148 = scmp.eq.s32.totalorder %s26, 1
      %p149 = por %p147, %p148
      %p150 = scmp.ne.s32.totalorder %s141, %s142
      %p151 = scmp.eq.s32.totalorder %s26, 0
      %p152 = por %p150, %p151
      %p153 = scmp.ne.s32.totalorder %s141, %s142
      %p154 = scmp.eq.s32.totalorder %s27, 1
      %p155 = por %p153, %p154
      %p157 = scmp.ne.s32.totalorder %s142, %s156
      %p158 = scmp.eq.s32.totalorder %s27, 0
      %p159 = por %p157, %p158
      %s161 = sadd.s32 %s160, 1
      %p164 = scmp.eq.s32.totalorder %s21, 1
      %p165 = scmp.ne.s32.totalorder %s160, %s162
      %p166 = scmp.eq.s32.totalorder %s21, 0
      %p167 = por %p165, %p166
      %p168 = scmp.ne.s32.totalorder %s160, %s162
      %p169 = scmp.eq.s32.totalorder %s26, 1
      %p170 = por %p168, %p169
      %p171 = scmp.ne.s32.totalorder %s162, %s163
      %p172 = scmp.eq.s32.totalorder %s26, 0
      %p173 = por %p171, %p172
      %p174 = scmp.ne.s32.totalorder %s162, %s163
      %p175 = scmp.eq.s32.totalorder %s27, 1
      %p176 = por %p174, %p175
      %p178 = scmp.ne.s32.totalorder %s163, %s177
      %p179 = scmp.eq.s32.totalorder %s27, 0
      %p180 = por %p178, %p179
      %s182 = sadd.s32 %s181, 1
      %p185 = scmp.eq.s32.totalorder %s21, 1
      %p186 = scmp.ne.s32.totalorder %s181, %s183
      %p187 = scmp.eq.s32.totalorder %s21, 0
      %p188 = por %p186, %p187
      %p189 = scmp.ne.s32.totalorder %s181, %s183
      %p190 = scmp.eq.s32.totalorder %s26, 1
      %p191 = por %p189, %p190
      %p192 = scmp.ne.s32.totalorder %s183, %s184
      %p193 = scmp.eq.s32.totalorder %s26, 0
      %p194 = por %p192, %p193
      %p195 = scmp.ne.s32.totalorder %s183, %s184
      %p196 = scmp.eq.s32.totalorder %s27, 1
      %p197 = por %p195, %p196
      %p199 = scmp.ne.s32.totalorder %s184, %s198
      %p200 = scmp.eq.s32.totalorder %s27, 0
      %p201 = por %p199, %p200
      %s203 = sadd.s32 %s202, 1
      %p206 = scmp.eq.s32.totalorder %s21, 1
      %p207 = scmp.ne.s32.totalorder %s202, %s204
      %p208 = scmp.eq.s32.totalorder %s21, 0
      %p209 = por %p207, %p208
      %p210 = scmp.ne.s32.totalorder %s202, %s204
      %p211 = scmp.eq.s32.totalorder %s26, 1
      %p212 = por %p210, %p211
      %p213 = scmp.ne.s32.totalorder %s204, %s205
      %p214 = scmp.eq.s32.totalorder %s26, 0
      %p215 = por %p213, %p214
      %p216 = scmp.ne.s32.totalorder %s204, %s205
      %p217 = scmp.eq.s32.totalorder %s27, 1
      %p218 = por %p216, %p217
      %p220 = scmp.ne.s32.totalorder %s205, %s219
      %p221 = scmp.eq.s32.totalorder %s27, 0
      %p222 = por %p220, %p221
      %s224 = sadd.s32 %s223, 1
      %p227 = scmp.eq.s32.totalorder %s21, 1
      %p228 = scmp.ne.s32.totalorder %s223, %s225
      %p229 = scmp.eq.s32.totalorder %s21, 0
      %p230 = por %p228, %p229
      %p231 = scmp.ne.s32.totalorder %s223, %s225
      %p232 = scmp.eq.s32.totalorder %s26, 1
      %p233 = por %p231, %p232
      %p234 = scmp.ne.s32.totalorder %s225, %s226
      %p235 = scmp.eq.s32.totalorder %s26, 0
      %p236 = por %p234, %p235
      %p237 = scmp.ne.s32.totalorder %s225, %s226
      %p238 = scmp.eq.s32.totalorder %s27, 1
      %p239 = por %p237, %p238
      %p241 = scmp.ne.s32.totalorder %s226, %s240
      %p242 = scmp.eq.s32.totalorder %s27, 0
      %p243 = por %p241, %p242
      %s245 = sadd.s32 %s244, 1
      %p248 = scmp.eq.s32.totalorder %s21, 1
      %p249 = scmp.ne.s32.totalorder %s244, %s246
      %p250 = scmp.eq.s32.totalorder %s21, 0
      %p251 = por %p249, %p250
      %p252 = scmp.ne.s32.totalorder %s244, %s246
      %p253 = scmp.eq.s32.totalorder %s26, 1
      %p254 = por %p252, %p253
      %p255 = scmp.ne.s32.totalorder %s246, %s247
      %p256 = scmp.eq.s32.totalorder %s26, 0
      %p257 = por %p255, %p256
      %p258 = scmp.ne.s32.totalorder %s246, %s247
      %p259 = scmp.eq.s32.totalorder %s27, 1
      %p260 = por %p258, %p259
      %p262 = scmp.ne.s32.totalorder %s247, %s261
      %p263 = scmp.eq.s32.totalorder %s27, 0
      %p264 = por %p262, %p263
      %s265 = ssub.s32 %s21, %s28
      %p266 = scmp.eq.s32.totalorder %s265, 0
      %s268 = sadd.s32 %s267, 1
      %s269 = scalar_select %p266, %s267, %s268
      %p272 = pneg %p266
      %p273 = scmp.eq.s32.totalorder %s21, 1
      %p274 = por %p272, %p273
      %p275 = scmp.ne.s32.totalorder %s267, %s270
      %p276 = scmp.eq.s32.totalorder %s21, 0
      %p277 = por %p275, %p276
      %p278 = scmp.ne.s32.totalorder %s267, %s270
      %p279 = scmp.eq.s32.totalorder %s26, 1
      %p280 = por %p278, %p279
      %p281 = scmp.ne.s32.totalorder %s270, %s271
      %p282 = scmp.eq.s32.totalorder %s26, 0
      %p283 = por %p281, %p282
      %p284 = scmp.ne.s32.totalorder %s270, %s271
      %p285 = scmp.eq.s32.totalorder %s27, 1
      %p286 = por %p284, %p285
      %p288 = scmp.ne.s32.totalorder %s271, %s287
      %p289 = scmp.eq.s32.totalorder %s27, 0
      %p290 = por %p288, %p289
      %p291 = scmp.le.s32.totalorder 1, %s21
      %p292 = scmp.lt.s32.totalorder %s21, 3
      %p293 = pnand %p291, %p292
      %p294 = pneg %p293
      // Predicated region
      $region9: #{lenet5_forward.1} parent=5 // pred_check
        _
      $region10: #{lenet5_forward.1} parent=5 // pred_check_branch
        %296 = sbr.rel (%p293) target = $region12
      $region11: #{lenet5_forward.1} parent=5 // pred_region
        %s297 = ssub.s32 %s21, 1
        // Predicated region
        $region13: #{lenet5_forward.1} parent=11 // pred_check
          %p298 = pneg %p68
        $region14: #{lenet5_forward.1} parent=11 // pred_check_branch
          %300 = sbr.rel (%p298) target = $region16
        $region15: #{lenet5_forward.1} parent=11 // pred_region
          _
        $region16: #{lenet5_forward.1} parent=11 // pred_fallthru
          _
        // Predicated region
        $region17: #{lenet5_forward.1} parent=11 // pred_check
          %p301 = pneg %p89
        $region18: #{lenet5_forward.1} parent=11 // pred_check_branch
          %303 = sbr.rel (%p301) target = $region20
        $region19: #{lenet5_forward.1} parent=11 // pred_region
          _
        $region20: #{lenet5_forward.1} parent=11 // pred_fallthru
          _
        // Predicated region
        $region21: #{lenet5_forward.1} parent=11 // pred_check
          %p304 = pneg %p110
        $region22: #{lenet5_forward.1} parent=11 // pred_check_branch
          %306 = sbr.rel (%p304) target = $region24
        $region23: #{lenet5_forward.1} parent=11 // pred_region
          %308 = vsyncadd [#allocation3], 0
          %s309 = sshll.u32 %s3, 4
          %s310 = int_to_ptr.hbm [resolvable:$true] %s309
          %s311 = sshll.u32 [#allocation2], 4
          %s312 = int_to_ptr.vmem [resolvable:$true] %s311
          %317 = dma.hbm_to_vmem [thread:$0]  %s310, 10240, %s312, [#allocation3], 128, 128, 8
        $region24: #{lenet5_forward.1} parent=11 // pred_fallthru
          _
        // Predicated region
        $region25: #{lenet5_forward.1} parent=11 // pred_check
          %p318 = pneg %p131
        $region26: #{lenet5_forward.1} parent=11 // pred_check_branch
          %320 = sbr.rel (%p318) target = $region28
        $region27: #{lenet5_forward.1} parent=11 // pred_region
          _
        $region28: #{lenet5_forward.1} parent=11 // pred_fallthru
          _
        // Predicated region
        $region29: #{lenet5_forward.1} parent=11 // pred_check
          %p321 = pneg %p152
        $region30: #{lenet5_forward.1} parent=11 // pred_check_branch
          %323 = sbr.rel (%p321) target = $region32
        $region31: #{lenet5_forward.1} parent=11 // pred_region
          _
        $region32: #{lenet5_forward.1} parent=11 // pred_fallthru
          _
        // Predicated region
        $region33: #{lenet5_forward.1} parent=11 // pred_check
          %p324 = pneg %p173
        $region34: #{lenet5_forward.1} parent=11 // pred_check_branch
          %326 = sbr.rel (%p324) target = $region36
        $region35: #{lenet5_forward.1} parent=11 // pred_region
          _
        $region36: #{lenet5_forward.1} parent=11 // pred_fallthru
          _
        // Predicated region
        $region37: #{lenet5_forward.1} parent=11 // pred_check
          %p327 = pneg %p194
        $region38: #{lenet5_forward.1} parent=11 // pred_check_branch
          %329 = sbr.rel (%p327) target = $region40
        $region39: #{lenet5_forward.1} parent=11 // pred_region
          _
        $region40: #{lenet5_forward.1} parent=11 // pred_fallthru
          _
        // Predicated region
        $region41: #{lenet5_forward.1} parent=11 // pred_check
          %p330 = pneg %p215
        $region42: #{lenet5_forward.1} parent=11 // pred_check_branch
          %332 = sbr.rel (%p330) target = $region44
        $region43: #{lenet5_forward.1} parent=11 // pred_region
          _
        $region44: #{lenet5_forward.1} parent=11 // pred_fallthru
          _
        // Predicated region
        $region45: #{lenet5_forward.1} parent=11 // pred_check
          %p333 = pneg %p236
        $region46: #{lenet5_forward.1} parent=11 // pred_check_branch
          %335 = sbr.rel (%p333) target = $region48
        $region47: #{lenet5_forward.1} parent=11 // pred_region
          _
        $region48: #{lenet5_forward.1} parent=11 // pred_fallthru
          _
        // Predicated region
        $region49: #{lenet5_forward.1} parent=11 // pred_check
          %p336 = pneg %p257
        $region50: #{lenet5_forward.1} parent=11 // pred_check_branch
          %338 = sbr.rel (%p336) target = $region52
        $region51: #{lenet5_forward.1} parent=11 // pred_region
          _
        $region52: #{lenet5_forward.1} parent=11 // pred_fallthru
          _
      $region12: #{lenet5_forward.1} parent=5 // pred_fallthru
        _
      %p339 = scmp.lt.s32.totalorder %s21, 2
      // Predicated region
      $region53: #{lenet5_forward.1} parent=5 // pred_check
        %p340 = pneg %p339
      $region54: #{lenet5_forward.1} parent=5 // pred_check_branch
        %342 = sbr.rel (%p340) target = $region56
      $region55: #{lenet5_forward.1} parent=5 // pred_region
        // Predicated region
        $region57: #{lenet5_forward.1} parent=55 // pred_check
          %p343 = pneg %p41
        $region58: #{lenet5_forward.1} parent=55 // pred_check_branch
          %345 = sbr.rel (%p343) target = $region60
        $region59: #{lenet5_forward.1} parent=55 // pred_region
          %p346 = scmp.lt.s32.totalorder %s21, 1
          %s347 = scalar_select %p346, %s21, 1
          %s348 = smul.addr %s347, 4
          %s349 = smul.addr %s348, 4
          %s350 = scalar_lea.vmem %s0, %s349
        $region60: #{lenet5_forward.1} parent=55 // pred_fallthru
          _
      $region56: #{lenet5_forward.1} parent=5 // pred_fallthru
        _
      %p351 = scmp.le.s32.totalorder 1, %s21
      %p352 = scmp.lt.s32.totalorder %s21, 3
      %p353 = pnand %p351, %p352
      %p354 = pneg %p353
      // Predicated region
      $region61: #{lenet5_forward.1} parent=5 // pred_check
        _
      $region62: #{lenet5_forward.1} parent=5 // pred_check_branch
        %356 = sbr.rel (%p353) target = $region64
      $region63: #{lenet5_forward.1} parent=5 // pred_region
        %s357 = ssub.s32 %s21, 1
        // Predicated region
        $region65: #{lenet5_forward.1} parent=63 // pred_check
          %p358 = pneg %p110
        $region66: #{lenet5_forward.1} parent=63 // pred_check_branch
          %360 = sbr.rel (%p358) target = $region68
        $region67: #{lenet5_forward.1} parent=63 // pred_region
          %362 = dma.done [#allocation3], 10240
        $region68: #{lenet5_forward.1} parent=63 // pred_fallthru
          _
        %p363 = scmp.lt.s32.totalorder %s26, 1
        %s364 = scalar_select %p363, %s26, 1
        %s365 = smul.addr %s364, 4
        %s366 = smul.addr %s365, 4
        %s367 = scalar_lea.vmem %s0, %s366
        %p368 = pneg %p47
        %p369 = pneg %p44
        %p370 = pneg %p68
        %p371 = pneg %p65
        %p372 = pneg %p89
        %p373 = pneg %p86
        %p374 = pneg %p110
        %p375 = pneg %p107
        %p376 = pneg %p131
        %p377 = pneg %p128
        %p378 = pneg %p152
        %p379 = pneg %p149
        %p380 = pneg %p173
        %p381 = pneg %p170
        %p382 = pneg %p194
        %p383 = pneg %p191
        %p384 = pneg %p215
        %p385 = pneg %p212
        %p386 = pneg %p236
        %p387 = pneg %p233
        %p388 = pneg %p257
        %p389 = pneg %p254
        %p390 = pneg %p283
        %p391 = pneg %p280
        %s392 = sand.u32 %s270, 1
        %s393 = scalar_lea.sflag [#allocation4], %s392
        %s394 = sand.u32 %s270, 1
        %s395 = scalar_lea.vmem [#allocation5], %s394
        %p396 = scmp.lt.s32.totalorder %s26, 1
        %s397 = scalar_select %p396, %s26, 1
        %s398 = smul.addr %s397, 4
        %s399 = smul.addr %s398, 4
        %s400 = scalar_lea.vmem %s0, %s399
        %v402 = vld [vmem:[%s400] sm:$0xf]
        %v403 = vld [vmem:[%s400 + $0x4] sm:$0xf]
        %v404 = vld [vmem:[%s400 + $0x8] sm:$0xf]
        %v405 = vld [vmem:[%s400 + $0xc] sm:$0xf]
        %v406 = vld [vmem:[%s1] sm:$0xff]
        %v407 = vld [vmem:[%s1 + $0x8] sm:$0xff]
        %v408 = vld [vmem:[%s1 + $0x10] sm:$0xff]
        %v409 = vld [vmem:[%s1 + $0x18] sm:$0xff]
        %v410 = vld [vmem:[%s1 + $0x20] sm:$0xff]
        %v411 = vld [vmem:[%s1 + $0x28] sm:$0xff]
        %v412 = vld [vmem:[%s1 + $0x30] sm:$0xff]
        %v413 = vld [vmem:[%s1 + $0x38] sm:$0xff]
        %v414 = vld [vmem:[%s1 + $0x40] sm:$0xff]
        %v415 = vld [vmem:[%s1 + $0x48] sm:$0xff]
        %v416 = vld [vmem:[%s1 + $0x50] sm:$0xff]
        %v417 = vld [vmem:[%s1 + $0x58] sm:$0xff]
        %v418 = vld [vmem:[%s1 + $0x60] sm:$0xff]
        %v419 = vld [vmem:[%s1 + $0x68] sm:$0xff]
        %v420 = vld [vmem:[%s1 + $0x70] sm:$0xff]
        %v421 = vld [vmem:[%s1 + $0x78] sm:$0xff]
        %v422 = vld [vmem:[%s1 + $0x80] sm:$0xff]
        %v423 = vld [vmem:[%s1 + $0x88] sm:$0xff]
        %v424 = vld [vmem:[%s1 + $0x90] sm:$0xff]
        %v425 = vld [vmem:[%s1 + $0x98] sm:$0xff]
        %v426 = vld [vmem:[%s1 + $0xa0] sm:$0xff]
        %v427 = vld [vmem:[%s1 + $0xa8] sm:$0xff]
        %v428 = vld [vmem:[%s1 + $0xb0] sm:$0xff]
        %v429 = vld [vmem:[%s1 + $0xb8] sm:$0xff]
        %v430 = vld [vmem:[%s1 + $0xc0] sm:$0xff]
        %v431 = vld [vmem:[%s1 + $0xc8] sm:$0xff]
        %v432 = vld [vmem:[%s1 + $0xd0] sm:$0xff]
        %v433 = vld [vmem:[%s1 + $0xd8] sm:$0xff]
        %v434 = vld [vmem:[%s1 + $0xe0] sm:$0xff]
        %v435 = vld [vmem:[%s1 + $0xe8] sm:$0xff]
        %v436 = vld [vmem:[%s1 + $0xf0] sm:$0xff]
        %v437 = vld [vmem:[%s1 + $0xf8] sm:$0xff]
        %v438 = vld [vmem:[%s1 + $0x100] sm:$0xff]
        %v439 = vld [vmem:[%s1 + $0x108] sm:$0xff]
        %v440 = vld [vmem:[%s1 + $0x110] sm:$0xff]
        %v441 = vld [vmem:[%s1 + $0x118] sm:$0xff]
        %v442 = vld [vmem:[%s1 + $0x120] sm:$0xff]
        %v443 = vld [vmem:[%s1 + $0x128] sm:$0xff]
        %v444 = vld [vmem:[%s1 + $0x130] sm:$0xff]
        %v445 = vld [vmem:[%s1 + $0x138] sm:$0xff]
        %v446 = vld [vmem:[%s1 + $0x140] sm:$0xff]
        %v447 = vld [vmem:[%s1 + $0x148] sm:$0xff]
        %v448 = vld [vmem:[%s1 + $0x150] sm:$0xff]
        %v449 = vld [vmem:[%s1 + $0x158] sm:$0xff]
        %v450 = vld [vmem:[%s1 + $0x160] sm:$0xff]
        %v451 = vld [vmem:[%s1 + $0x168] sm:$0xff]
        %v452 = vld [vmem:[%s1 + $0x170] sm:$0xff]
        %v453 = vld [vmem:[%s1 + $0x178] sm:$0xff]
        %v454 = vld [vmem:[%s1 + $0x180] sm:$0xff]
        %v455 = vld [vmem:[%s1 + $0x188] sm:$0xff]
        %v456 = vld [vmem:[%s1 + $0x190] sm:$0xff]
        %v457 = vld [vmem:[%s1 + $0x198] sm:$0xff]
        %v458 = vld [vmem:[%s1 + $0x1a0] sm:$0xff]
        %v459 = vld [vmem:[%s1 + $0x1a8] sm:$0xff]
        %v460 = vld [vmem:[%s1 + $0x1b0] sm:$0xff]
        %v461 = vld [vmem:[%s1 + $0x1b8] sm:$0xff]
        %v462 = vld [vmem:[%s1 + $0x1c0] sm:$0xff]
        %v463 = vld [vmem:[%s1 + $0x1c8] sm:$0xff]
        %v464 = vld [vmem:[%s1 + $0x1d0] sm:$0xff]
        %v465 = vld [vmem:[%s1 + $0x1d8] sm:$0xff]
        %v466 = vld [vmem:[%s1 + $0x1e0] sm:$0xff]
        %v467 = vld [vmem:[%s1 + $0x1e8] sm:$0xff]
        %v468 = vld [vmem:[%s1 + $0x1f0] sm:$0xff]
        %v469 = vld [vmem:[%s1 + $0x1f8] sm:$0xff]
        %v470 = vld [vmem:[%s1 + $0x200] sm:$0xff]
        %v471 = vld [vmem:[%s1 + $0x208] sm:$0xff]
        %v472 = vld [vmem:[%s1 + $0x210] sm:$0xff]
        %v473 = vld [vmem:[%s1 + $0x218] sm:$0xff]
        %v474 = vld [vmem:[%s1 + $0x220] sm:$0xff]
        %v475 = vld [vmem:[%s1 + $0x228] sm:$0xff]
        %v476 = vld [vmem:[%s1 + $0x230] sm:$0xff]
        %v477 = vld [vmem:[%s1 + $0x238] sm:$0xff]
        %v478 = vld [vmem:[%s1 + $0x240] sm:$0xff]
        %v479 = vld [vmem:[%s1 + $0x248] sm:$0xff]
        %v480 = vld [vmem:[%s1 + $0x250] sm:$0xff]
        %v481 = vld [vmem:[%s1 + $0x258] sm:$0xff]
        %v482 = vld [vmem:[%s1 + $0x260] sm:$0xff]
        %v483 = vld [vmem:[%s1 + $0x268] sm:$0xff]
        %v484 = vld [vmem:[%s1 + $0x270] sm:$0xff]
        %v485 = vld [vmem:[%s1 + $0x278] sm:$0xff]
        %v486 = vld [vmem:[#allocation2] sm:$0xff]
        %v487 = vld [vmem:[#allocation2 + $0x8] sm:$0xff]
        %v488 = vld [vmem:[#allocation2 + $0x10] sm:$0xff]
        %v489 = vld [vmem:[#allocation2 + $0x18] sm:$0xff]
        %v490 = vld [vmem:[#allocation2 + $0x20] sm:$0xff]
        %v491 = vld [vmem:[#allocation2 + $0x28] sm:$0xff]
        %v492 = vld [vmem:[#allocation2 + $0x30] sm:$0xff]
        %v493 = vld [vmem:[#allocation2 + $0x38] sm:$0xff]
        %v494 = vld [vmem:[#allocation2 + $0x40] sm:$0xff]
        %v495 = vld [vmem:[#allocation2 + $0x48] sm:$0xff]
        %v496 = vld [vmem:[#allocation2 + $0x50] sm:$0xff]
        %v497 = vld [vmem:[#allocation2 + $0x58] sm:$0xff]
        %v498 = vld [vmem:[#allocation2 + $0x60] sm:$0xff]
        %v499 = vld [vmem:[#allocation2 + $0x68] sm:$0xff]
        %v500 = vld [vmem:[#allocation2 + $0x70] sm:$0xff]
        %v501 = vld [vmem:[#allocation2 + $0x78] sm:$0xff]
        %v502 = vld [vmem:[#allocation2 + $0x80] sm:$0xff]
        %v503 = vld [vmem:[#allocation2 + $0x88] sm:$0xff]
        %v504 = vld [vmem:[#allocation2 + $0x90] sm:$0xff]
        %v505 = vld [vmem:[#allocation2 + $0x98] sm:$0xff]
        %v506 = vld [vmem:[#allocation2 + $0xa0] sm:$0xff]
        %v507 = vld [vmem:[#allocation2 + $0xa8] sm:$0xff]
        %v508 = vld [vmem:[#allocation2 + $0xb0] sm:$0xff]
        %v509 = vld [vmem:[#allocation2 + $0xb8] sm:$0xff]
        %v510 = vld [vmem:[#allocation2 + $0xc0] sm:$0xff]
        %v511 = vld [vmem:[#allocation2 + $0xc8] sm:$0xff]
        %v512 = vld [vmem:[#allocation2 + $0xd0] sm:$0xff]
        %v513 = vld [vmem:[#allocation2 + $0xd8] sm:$0xff]
        %v514 = vld [vmem:[#allocation2 + $0xe0] sm:$0xff]
        %v515 = vld [vmem:[#allocation2 + $0xe8] sm:$0xff]
        %v516 = vld [vmem:[#allocation2 + $0xf0] sm:$0xff]
        %v517 = vld [vmem:[#allocation2 + $0xf8] sm:$0xff]
        %v518 = vld [vmem:[#allocation2 + $0x100] sm:$0xff]
        %v519 = vld [vmem:[#allocation2 + $0x108] sm:$0xff]
        %v520 = vld [vmem:[#allocation2 + $0x110] sm:$0xff]
        %v521 = vld [vmem:[#allocation2 + $0x118] sm:$0xff]
        %v522 = vld [vmem:[#allocation2 + $0x120] sm:$0xff]
        %v523 = vld [vmem:[#allocation2 + $0x128] sm:$0xff]
        %v524 = vld [vmem:[#allocation2 + $0x130] sm:$0xff]
        %v525 = vld [vmem:[#allocation2 + $0x138] sm:$0xff]
        %v526 = vld [vmem:[#allocation2 + $0x140] sm:$0xff]
        %v527 = vld [vmem:[#allocation2 + $0x148] sm:$0xff]
        %v528 = vld [vmem:[#allocation2 + $0x150] sm:$0xff]
        %v529 = vld [vmem:[#allocation2 + $0x158] sm:$0xff]
        %v530 = vld [vmem:[#allocation2 + $0x160] sm:$0xff]
        %v531 = vld [vmem:[#allocation2 + $0x168] sm:$0xff]
        %v532 = vld [vmem:[#allocation2 + $0x170] sm:$0xff]
        %v533 = vld [vmem:[#allocation2 + $0x178] sm:$0xff]
        %v534 = vld [vmem:[#allocation2 + $0x180] sm:$0xff]
        %v535 = vld [vmem:[#allocation2 + $0x188] sm:$0xff]
        %v536 = vld [vmem:[#allocation2 + $0x190] sm:$0xff]
        %v537 = vld [vmem:[#allocation2 + $0x198] sm:$0xff]
        %v538 = vld [vmem:[#allocation2 + $0x1a0] sm:$0xff]
        %v539 = vld [vmem:[#allocation2 + $0x1a8] sm:$0xff]
        %v540 = vld [vmem:[#allocation2 + $0x1b0] sm:$0xff]
        %v541 = vld [vmem:[#allocation2 + $0x1b8] sm:$0xff]
        %v542 = vld [vmem:[#allocation2 + $0x1c0] sm:$0xff]
        %v543 = vld [vmem:[#allocation2 + $0x1c8] sm:$0xff]
        %v544 = vld [vmem:[#allocation2 + $0x1d0] sm:$0xff]
        %v545 = vld [vmem:[#allocation2 + $0x1d8] sm:$0xff]
        %v546 = vld [vmem:[#allocation2 + $0x1e0] sm:$0xff]
        %v547 = vld [vmem:[#allocation2 + $0x1e8] sm:$0xff]
        %v548 = vld [vmem:[#allocation2 + $0x1f0] sm:$0xff]
        %v549 = vld [vmem:[#allocation2 + $0x1f8] sm:$0xff]
        %v550 = vld [vmem:[#allocation2 + $0x200] sm:$0xff]
        %v551 = vld [vmem:[#allocation2 + $0x208] sm:$0xff]
        %v552 = vld [vmem:[#allocation2 + $0x210] sm:$0xff]
        %v553 = vld [vmem:[#allocation2 + $0x218] sm:$0xff]
        %v554 = vld [vmem:[#allocation2 + $0x220] sm:$0xff]
        %v555 = vld [vmem:[#allocation2 + $0x228] sm:$0xff]
        %v556 = vld [vmem:[#allocation2 + $0x230] sm:$0xff]
        %v557 = vld [vmem:[#allocation2 + $0x238] sm:$0xff]
        %v558 = vld [vmem:[#allocation2 + $0x240] sm:$0xff]
        %v559 = vld [vmem:[#allocation2 + $0x248] sm:$0xff]
        %v560 = vld [vmem:[#allocation2 + $0x250] sm:$0xff]
        %v561 = vld [vmem:[#allocation2 + $0x258] sm:$0xff]
        %v562 = vld [vmem:[#allocation2 + $0x260] sm:$0xff]
        %v563 = vld [vmem:[#allocation2 + $0x268] sm:$0xff]
        %v564 = vld [vmem:[#allocation2 + $0x270] sm:$0xff]
        %v565 = vld [vmem:[#allocation2 + $0x278] sm:$0xff]
        %v567 = vunpack.c.l.b16 %v402
        %v568 = vpack.c.b16 %v567, %v567
        %v570 = vshrl.u32 %v568, 16
        %v572 = vshll.u32 %v568, 16
        %v574 = vrot.slane %v572, 1
        %v575 = vor.u32 %v570, %v574
        %v578 = vunpack.c.l.b16 %v403
        %v579 = vpack.c.b16 %v578, %v578
        %v581 = vshrl.u32 %v579, 16
        %v583 = vshll.u32 %v579, 16
        %v585 = vrot.slane %v583, 1
        %v586 = vor.u32 %v581, %v585
        %v588 = vunpack.c.l.b16 %v404
        %v589 = vpack.c.b16 %v588, %v588
        %v591 = vshrl.u32 %v589, 16
        %v593 = vshll.u32 %v589, 16
        %v595 = vrot.slane %v593, 1
        %v596 = vor.u32 %v591, %v595
        %v598 = vunpack.c.l.b16 %v405
        %v599 = vpack.c.b16 %v598, %v598
        %v601 = vshrl.u32 %v599, 16
        %v603 = vshll.u32 %v599, 16
        %v605 = vrot.slane %v603, 1
        %v606 = vor.u32 %v601, %v605
        %v608 = vshrl.u32 %v403, 16
        %v610 = vrot.slane %v608, 4
        %v611 = vshll.u32 %v403, 16
        %v613 = vrot.slane %v611, 5
        %v614 = vor.u32 %v610, %v613
        %v616 = vshrl.u32 %v404, 16
        %v618 = vrot.slane %v616, 4
        %v619 = vshll.u32 %v404, 16
        %v621 = vrot.slane %v619, 5
        %v622 = vor.u32 %v618, %v621
        %v624 = vshrl.u32 %v405, 16
        %v626 = vrot.slane %v624, 4
        %v627 = vshll.u32 %v405, 16
        %v629 = vrot.slane %v627, 5
        %v630 = vor.u32 %v626, %v629
        %v632 = vshrl.u32 %v575, 16
        %v634 = vrot.slane %v632, 4
        %v635 = vshll.u32 %v575, 16
        %v637 = vrot.slane %v635, 5
        %v638 = vor.u32 %v634, %v637
        %v640 = vshrl.u32 %v586, 16
        %v642 = vrot.slane %v640, 4
        %v643 = vshll.u32 %v586, 16
        %v645 = vrot.slane %v643, 5
        %v646 = vor.u32 %v642, %v645
        %v652 = vrot.slane %v404, 1
        %v653 = vrot.slane %v405, 1
        %v654 = vrot.slane %v575, 1
        %v655 = vrot.slane %v586, 1
        %v656 = vrot.slane %v596, 1
        %v662 = vrot.slane %v624, 5
        %v663 = vrot.slane %v627, 6
        %v664 = vor.u32 %v662, %v663
        %v665 = vrot.slane %v632, 5
        %v666 = vrot.slane %v635, 6
        %v667 = vor.u32 %v665, %v666
        %v668 = vrot.slane %v640, 5
        %v669 = vrot.slane %v643, 6
        %v670 = vor.u32 %v668, %v669
        %v672 = vshrl.u32 %v596, 16
        %v674 = vrot.slane %v672, 5
        %v675 = vshll.u32 %v596, 16
        %v677 = vrot.slane %v675, 6
        %v678 = vor.u32 %v674, %v677
        %v680 = vshrl.u32 %v606, 16
        %v682 = vrot.slane %v680, 5
        %v683 = vshll.u32 %v606, 16
        %v685 = vrot.slane %v683, 6
        %v686 = vor.u32 %v682, %v685
        %vm692 = vcmask 1043456
        %vm693 = vsmask.f32 3328
        %vm694 = vmand %vm692, %vm693
        %v695 = vsel %vm694, %v402, %v614
        %v696 = vsel %vm694, %v403, %v622
        %v697 = vsel %vm694, %v404, %v630
        %v698 = vsel %vm694, %v405, %v638
        %v699 = vsel %vm694, %v575, %v646
        %vm700 = vcmask 1046528
        %v703 = vsel %vm700, %v695, %v652
        %v707 = vsel %vm700, %v696, %v653
        %v711 = vsel %vm700, %v697, %v654
        %v715 = vsel %vm700, %v698, %v655
        %v719 = vsel %vm700, %v699, %v656
        %vm721 = vcmask 1042432
        %vm722 = vsmask.f32 2304
        %vm723 = vmand %vm721, %vm722
        %v724 = vsel %vm723, %v652, %v664
        %v725 = vsel %vm723, %v653, %v667
        %v726 = vsel %vm723, %v654, %v670
        %v727 = vsel %vm723, %v655, %v678
        %v728 = vsel %vm723, %v656, %v686
        %v809 = vunpack.c.l.b16 %v406
        %v810 = vunpack.c.h.b16 %v406
        %v811 = vunpack.c.l.b16 %v407
        %v812 = vunpack.c.h.b16 %v407
        %v813 = vunpack.c.l.b16 %v408
        %v814 = vunpack.c.h.b16 %v408
        %v815 = vunpack.c.l.b16 %v409
        %v816 = vunpack.c.h.b16 %v409
        %v817 = vunpack.c.l.b16 %v410
        %v818 = vunpack.c.h.b16 %v410
        %v819 = vunpack.c.l.b16 %v411
        %v820 = vunpack.c.h.b16 %v411
        %v821 = vunpack.c.l.b16 %v412
        %v822 = vunpack.c.h.b16 %v412
        %v823 = vunpack.c.l.b16 %v413
        %v824 = vunpack.c.h.b16 %v413
        %v825 = vunpack.c.l.b16 %v414
        %v826 = vunpack.c.h.b16 %v414
        %v827 = vunpack.c.l.b16 %v415
        %v828 = vunpack.c.h.b16 %v415
        %v829 = vunpack.c.l.b16 %v416
        %v830 = vunpack.c.h.b16 %v416
        %v831 = vunpack.c.l.b16 %v417
        %v832 = vunpack.c.h.b16 %v417
        %v833 = vunpack.c.l.b16 %v418
        %v834 = vunpack.c.h.b16 %v418
        %v835 = vunpack.c.l.b16 %v419
        %v836 = vunpack.c.h.b16 %v419
        %v837 = vunpack.c.l.b16 %v420
        %v838 = vunpack.c.h.b16 %v420
        %v839 = vunpack.c.l.b16 %v421
        %v840 = vunpack.c.h.b16 %v421
        %v841 = vunpack.c.l.b16 %v422
        %v842 = vunpack.c.h.b16 %v422
        %v843 = vunpack.c.l.b16 %v423
        %v844 = vunpack.c.h.b16 %v423
        %v845 = vunpack.c.l.b16 %v424
        %v846 = vunpack.c.h.b16 %v424
        %v847 = vunpack.c.l.b16 %v425
        %v848 = vunpack.c.h.b16 %v425
        %v849 = vunpack.c.l.b16 %v426
        %v850 = vunpack.c.h.b16 %v426
        %v851 = vunpack.c.l.b16 %v427
        %v852 = vunpack.c.h.b16 %v427
        %v853 = vunpack.c.l.b16 %v428
        %v854 = vunpack.c.h.b16 %v428
        %v855 = vunpack.c.l.b16 %v429
        %v856 = vunpack.c.h.b16 %v429
        %v857 = vunpack.c.l.b16 %v430
        %v858 = vunpack.c.h.b16 %v430
        %v859 = vunpack.c.l.b16 %v431
        %v860 = vunpack.c.h.b16 %v431
        %v861 = vunpack.c.l.b16 %v432
        %v862 = vunpack.c.h.b16 %v432
        %v863 = vunpack.c.l.b16 %v433
        %v864 = vunpack.c.h.b16 %v433
        %v865 = vunpack.c.l.b16 %v434
        %v866 = vunpack.c.h.b16 %v434
        %v867 = vunpack.c.l.b16 %v435
        %v868 = vunpack.c.h.b16 %v435
        %v869 = vunpack.c.l.b16 %v436
        %v870 = vunpack.c.h.b16 %v436
        %v871 = vunpack.c.l.b16 %v437
        %v872 = vunpack.c.h.b16 %v437
        %v873 = vunpack.c.l.b16 %v438
        %v874 = vunpack.c.h.b16 %v438
        %v875 = vunpack.c.l.b16 %v439
        %v876 = vunpack.c.h.b16 %v439
        %v877 = vunpack.c.l.b16 %v440
        %v878 = vunpack.c.h.b16 %v440
        %v879 = vunpack.c.l.b16 %v441
        %v880 = vunpack.c.h.b16 %v441
        %v881 = vunpack.c.l.b16 %v442
        %v882 = vunpack.c.h.b16 %v442
        %v883 = vunpack.c.l.b16 %v443
        %v884 = vunpack.c.h.b16 %v443
        %v885 = vunpack.c.l.b16 %v444
        %v886 = vunpack.c.h.b16 %v444
        %v887 = vunpack.c.l.b16 %v445
        %v888 = vunpack.c.h.b16 %v445
        %v889 = vunpack.c.l.b16 %v446
        %v890 = vunpack.c.h.b16 %v446
        %v891 = vunpack.c.l.b16 %v447
        %v892 = vunpack.c.h.b16 %v447
        %v893 = vunpack.c.l.b16 %v448
        %v894 = vunpack.c.h.b16 %v448
        %v895 = vunpack.c.l.b16 %v449
        %v896 = vunpack.c.h.b16 %v449
        %v897 = vunpack.c.l.b16 %v450
        %v898 = vunpack.c.h.b16 %v450
        %v899 = vunpack.c.l.b16 %v451
        %v900 = vunpack.c.h.b16 %v451
        %v901 = vunpack.c.l.b16 %v452
        %v902 = vunpack.c.h.b16 %v452
        %v903 = vunpack.c.l.b16 %v453
        %v904 = vunpack.c.h.b16 %v453
        %v905 = vunpack.c.l.b16 %v454
        %v906 = vunpack.c.h.b16 %v454
        %v907 = vunpack.c.l.b16 %v455
        %v908 = vunpack.c.h.b16 %v455
        %v909 = vunpack.c.l.b16 %v456
        %v910 = vunpack.c.h.b16 %v456
        %v911 = vunpack.c.l.b16 %v457
        %v912 = vunpack.c.h.b16 %v457
        %v913 = vunpack.c.l.b16 %v458
        %v914 = vunpack.c.h.b16 %v458
        %v915 = vunpack.c.l.b16 %v459
        %v916 = vunpack.c.h.b16 %v459
        %v917 = vunpack.c.l.b16 %v460
        %v918 = vunpack.c.h.b16 %v460
        %v919 = vunpack.c.l.b16 %v461
        %v920 = vunpack.c.h.b16 %v461
        %v921 = vunpack.c.l.b16 %v462
        %v922 = vunpack.c.h.b16 %v462
        %v923 = vunpack.c.l.b16 %v463
        %v924 = vunpack.c.h.b16 %v463
        %v925 = vunpack.c.l.b16 %v464
        %v926 = vunpack.c.h.b16 %v464
        %v927 = vunpack.c.l.b16 %v465
        %v928 = vunpack.c.h.b16 %v465
        %v929 = vunpack.c.l.b16 %v466
        %v930 = vunpack.c.h.b16 %v466
        %v931 = vunpack.c.l.b16 %v467
        %v932 = vunpack.c.h.b16 %v467
        %v933 = vunpack.c.l.b16 %v468
        %v934 = vunpack.c.h.b16 %v468
        %v935 = vunpack.c.l.b16 %v469
        %v936 = vunpack.c.h.b16 %v469
        %v937 = vunpack.c.l.b16 %v470
        %v938 = vunpack.c.h.b16 %v470
        %v939 = vunpack.c.l.b16 %v471
        %v940 = vunpack.c.h.b16 %v471
        %v941 = vunpack.c.l.b16 %v472
        %v942 = vunpack.c.h.b16 %v472
        %v943 = vunpack.c.l.b16 %v473
        %v944 = vunpack.c.h.b16 %v473
        %v945 = vunpack.c.l.b16 %v474
        %v946 = vunpack.c.h.b16 %v474
        %v947 = vunpack.c.l.b16 %v475
        %v948 = vunpack.c.h.b16 %v475
        %v949 = vunpack.c.l.b16 %v476
        %v950 = vunpack.c.h.b16 %v476
        %v951 = vunpack.c.l.b16 %v477
        %v952 = vunpack.c.h.b16 %v477
        %v953 = vunpack.c.l.b16 %v478
        %v954 = vunpack.c.h.b16 %v478
        %v955 = vunpack.c.l.b16 %v479
        %v956 = vunpack.c.h.b16 %v479
        %v957 = vunpack.c.l.b16 %v480
        %v958 = vunpack.c.h.b16 %v480
        %v959 = vunpack.c.l.b16 %v481
        %v960 = vunpack.c.h.b16 %v481
        %v961 = vunpack.c.l.b16 %v482
        %v962 = vunpack.c.h.b16 %v482
        %v963 = vunpack.c.l.b16 %v483
        %v964 = vunpack.c.h.b16 %v483
        %v965 = vunpack.c.l.b16 %v484
        %v966 = vunpack.c.h.b16 %v484
        %v967 = vunpack.c.l.b16 %v485
        %v968 = vunpack.c.h.b16 %v485
        %v969 = vpack.c.b16 %v811, %v809
        %v970 = vpack.c.b16 %v812, %v810
        %v971 = vpack.c.b16 %v815, %v813
        %v972 = vpack.c.b16 %v816, %v814
        %v973 = vpack.c.b16 %v819, %v817
        %v974 = vpack.c.b16 %v820, %v818
        %v975 = vpack.c.b16 %v823, %v821
        %v976 = vpack.c.b16 %v824, %v822
        %v977 = vpack.c.b16 %v827, %v825
        %v978 = vpack.c.b16 %v828, %v826
        %v979 = vpack.c.b16 %v831, %v829
        %v980 = vpack.c.b16 %v832, %v830
        %v981 = vpack.c.b16 %v835, %v833
        %v982 = vpack.c.b16 %v836, %v834
        %v983 = vpack.c.b16 %v839, %v837
        %v984 = vpack.c.b16 %v840, %v838
        %v985 = vpack.c.b16 %v843, %v841
        %v986 = vpack.c.b16 %v844, %v842
        %v987 = vpack.c.b16 %v847, %v845
        %v988 = vpack.c.b16 %v848, %v846
        %v989 = vpack.c.b16 %v851, %v849
        %v990 = vpack.c.b16 %v852, %v850
        %v991 = vpack.c.b16 %v855, %v853
        %v992 = vpack.c.b16 %v856, %v854
        %v993 = vpack.c.b16 %v859, %v857
        %v994 = vpack.c.b16 %v860, %v858
        %v995 = vpack.c.b16 %v863, %v861
        %v996 = vpack.c.b16 %v864, %v862
        %v997 = vpack.c.b16 %v867, %v865
        %v998 = vpack.c.b16 %v868, %v866
        %v999 = vpack.c.b16 %v871, %v869
        %v1000 = vpack.c.b16 %v872, %v870
        %v1001 = vpack.c.b16 %v875, %v873
        %v1002 = vpack.c.b16 %v876, %v874
        %v1003 = vpack.c.b16 %v879, %v877
        %v1004 = vpack.c.b16 %v880, %v878
        %v1005 = vpack.c.b16 %v883, %v881
        %v1006 = vpack.c.b16 %v884, %v882
        %v1007 = vpack.c.b16 %v887, %v885
        %v1008 = vpack.c.b16 %v888, %v886
        %v1009 = vpack.c.b16 %v891, %v889
        %v1010 = vpack.c.b16 %v892, %v890
        %v1011 = vpack.c.b16 %v895, %v893
        %v1012 = vpack.c.b16 %v896, %v894
        %v1013 = vpack.c.b16 %v899, %v897
        %v1014 = vpack.c.b16 %v900, %v898
        %v1015 = vpack.c.b16 %v903, %v901
        %v1016 = vpack.c.b16 %v904, %v902
        %v1017 = vpack.c.b16 %v907, %v905
        %v1018 = vpack.c.b16 %v908, %v906
        %v1019 = vpack.c.b16 %v911, %v909
        %v1020 = vpack.c.b16 %v912, %v910
        %v1021 = vpack.c.b16 %v915, %v913
        %v1022 = vpack.c.b16 %v916, %v914
        %v1023 = vpack.c.b16 %v919, %v917
        %v1024 = vpack.c.b16 %v920, %v918
        %v1025 = vpack.c.b16 %v923, %v921
        %v1026 = vpack.c.b16 %v924, %v922
        %v1027 = vpack.c.b16 %v927, %v925
        %v1028 = vpack.c.b16 %v928, %v926
        %v1029 = vpack.c.b16 %v931, %v929
        %v1030 = vpack.c.b16 %v932, %v930
        %v1031 = vpack.c.b16 %v935, %v933
        %v1032 = vpack.c.b16 %v936, %v934
        %v1033 = vpack.c.b16 %v939, %v937
        %v1034 = vpack.c.b16 %v940, %v938
        %v1035 = vpack.c.b16 %v943, %v941
        %v1036 = vpack.c.b16 %v944, %v942
        %v1037 = vpack.c.b16 %v947, %v945
        %v1038 = vpack.c.b16 %v948, %v946
        %v1039 = vpack.c.b16 %v951, %v949
        %v1040 = vpack.c.b16 %v952, %v950
        %v1041 = vpack.c.b16 %v955, %v953
        %v1042 = vpack.c.b16 %v956, %v954
        %v1043 = vpack.c.b16 %v959, %v957
        %v1044 = vpack.c.b16 %v960, %v958
        %v1045 = vpack.c.b16 %v963, %v961
        %v1046 = vpack.c.b16 %v964, %v962
        %v1047 = vpack.c.b16 %v967, %v965
        %v1048 = vpack.c.b16 %v968, %v966
        %1129 = vmatpush.bf16.msra.mxu0 %v983
        %1130 = vmatpush.bf16.msra.mxu0 %v981
        %1131 = vmatpush.bf16.msra.mxu0 %v979
        %1132 = vmatpush.bf16.msra.mxu0 %v977
        %1133 = vmatpush.bf16.msra.mxu0 %v975
        %1134 = vmatpush.bf16.msra.mxu0 %v973
        %1135 = vmatpush.bf16.msra.mxu0 %v971
        %1136 = vmatpush.bf16.msra.mxu0 %v969
        %1137 = vmatmul.bf16.gmra.mxu0 %v703
        %v1138 = vpop.f32.mrf.mxu0
        %v1139 = vadd.f32 0.0, %v1138
        %v1140 = vpop.f32.mrf.mxu0
        %v1141 = vadd.f32 0.0, %v1140
        %1142 = vmatmul.bf16.gmra.mxu0 %v724
        %v1143 = vpop.f32.mrf.mxu0
        %v1144 = vadd.f32 0.0, %v1143
        %v1145 = vpop.f32.mrf.mxu0
        %v1146 = vadd.f32 0.0, %v1145
        %1147 = vdwg.mxu0
        %1148 = vmatpush.bf16.msra.mxu0 %v999
        %1149 = vmatpush.bf16.msra.mxu0 %v997
        %1150 = vmatpush.bf16.msra.mxu0 %v995
        %1151 = vmatpush.bf16.msra.mxu0 %v993
        %1152 = vmatpush.bf16.msra.mxu0 %v991
        %1153 = vmatpush.bf16.msra.mxu0 %v989
        %1154 = vmatpush.bf16.msra.mxu0 %v987
        %1155 = vmatpush.bf16.msra.mxu0 %v985
        %1156 = vmatmul.bf16.gmra.mxu0 %v707
        %v1157 = vpop.f32.mrf.mxu0
        %v1158 = vadd.f32 %v1139, %v1157
        %v1159 = vpop.f32.mrf.mxu0
        %v1160 = vadd.f32 %v1141, %v1159
        %1161 = vmatmul.bf16.gmra.mxu0 %v725
        %v1162 = vpop.f32.mrf.mxu0
        %v1163 = vadd.f32 %v1144, %v1162
        %v1164 = vpop.f32.mrf.mxu0
        %v1165 = vadd.f32 %v1146, %v1164
        %1166 = vdwg.mxu0
        %1167 = vmatpush.bf16.msra.mxu0 %v1015
        %1168 = vmatpush.bf16.msra.mxu0 %v1013
        %1169 = vmatpush.bf16.msra.mxu0 %v1011
        %1170 = vmatpush.bf16.msra.mxu0 %v1009
        %1171 = vmatpush.bf16.msra.mxu0 %v1007
        %1172 = vmatpush.bf16.msra.mxu0 %v1005
        %1173 = vmatpush.bf16.msra.mxu0 %v1003
        %1174 = vmatpush.bf16.msra.mxu0 %v1001
        %1175 = vmatmul.bf16.gmra.mxu0 %v711
        %v1176 = vpop.f32.mrf.mxu0
        %v1177 = vadd.f32 %v1158, %v1176
        %v1178 = vpop.f32.mrf.mxu0
        %v1179 = vadd.f32 %v1160, %v1178
        %1180 = vmatmul.bf16.gmra.mxu0 %v726
        %v1181 = vpop.f32.mrf.mxu0
        %v1182 = vadd.f32 %v1163, %v1181
        %v1183 = vpop.f32.mrf.mxu0
        %v1184 = vadd.f32 %v1165, %v1183
        %1185 = vdwg.mxu0
        %1186 = vmatpush.bf16.msra.mxu0 %v1031
        %1187 = vmatpush.bf16.msra.mxu0 %v1029
        %1188 = vmatpush.bf16.msra.mxu0 %v1027
        %1189 = vmatpush.bf16.msra.mxu0 %v1025
        %1190 = vmatpush.bf16.msra.mxu0 %v1023
        %1191 = vmatpush.bf16.msra.mxu0 %v1021
        %1192 = vmatpush.bf16.msra.mxu0 %v1019
        %1193 = vmatpush.bf16.msra.mxu0 %v1017
        %1194 = vmatmul.bf16.gmra.mxu0 %v715
        %v1195 = vpop.f32.mrf.mxu0
        %v1196 = vadd.f32 %v1177, %v1195
        %v1197 = vpop.f32.mrf.mxu0
        %v1198 = vadd.f32 %v1179, %v1197
        %1199 = vmatmul.bf16.gmra.mxu0 %v727
        %v1200 = vpop.f32.mrf.mxu0
        %v1201 = vadd.f32 %v1182, %v1200
        %v1202 = vpop.f32.mrf.mxu0
        %v1203 = vadd.f32 %v1184, %v1202
        %1204 = vdwg.mxu0
        %1205 = vmatpush.bf16.msra.mxu0 %v1047
        %1206 = vmatpush.bf16.msra.mxu0 %v1045
        %1207 = vmatpush.bf16.msra.mxu0 %v1043
        %1208 = vmatpush.bf16.msra.mxu0 %v1041
        %1209 = vmatpush.bf16.msra.mxu0 %v1039
        %1210 = vmatpush.bf16.msra.mxu0 %v1037
        %1211 = vmatpush.bf16.msra.mxu0 %v1035
        %1212 = vmatpush.bf16.msra.mxu0 %v1033
        %1213 = vmatmul.bf16.gmra.mxu0 %v719
        %v1214 = vpop.f32.mrf.mxu0
        %v1215 = vadd.f32 %v1196, %v1214
        %v1216 = vpop.f32.mrf.mxu0
        %v1217 = vadd.f32 %v1198, %v1216
        %1218 = vmatmul.bf16.gmra.mxu0 %v728
        %v1219 = vpop.f32.mrf.mxu0
        %v1220 = vadd.f32 %v1201, %v1219
        %v1221 = vpop.f32.mrf.mxu0
        %v1222 = vadd.f32 %v1203, %v1221
        %1223 = vdwg.mxu0
        %1224 = vmatpush.bf16.msra.mxu0 %v984
        %1225 = vmatpush.bf16.msra.mxu0 %v982
        %1226 = vmatpush.bf16.msra.mxu0 %v980
        %1227 = vmatpush.bf16.msra.mxu0 %v978
        %1228 = vmatpush.bf16.msra.mxu0 %v976
        %1229 = vmatpush.bf16.msra.mxu0 %v974
        %1230 = vmatpush.bf16.msra.mxu0 %v972
        %1231 = vmatpush.bf16.msra.mxu0 %v970
        %1232 = vmatmul.bf16.gmra.mxu0 %v703
        %v1233 = vpop.f32.mrf.mxu0
        %v1234 = vadd.f32 0.0, %v1233
        %v1235 = vpop.f32.mrf.mxu0
        %v1236 = vadd.f32 0.0, %v1235
        %1237 = vmatmul.bf16.gmra.mxu0 %v724
        %v1238 = vpop.f32.mrf.mxu0
        %v1239 = vadd.f32 0.0, %v1238
        %v1240 = vpop.f32.mrf.mxu0
        %v1241 = vadd.f32 0.0, %v1240
        %1242 = vdwg.mxu0
        %1243 = vmatpush.bf16.msra.mxu0 %v1000
        %1244 = vmatpush.bf16.msra.mxu0 %v998
        %1245 = vmatpush.bf16.msra.mxu0 %v996
        %1246 = vmatpush.bf16.msra.mxu0 %v994
        %1247 = vmatpush.bf16.msra.mxu0 %v992
        %1248 = vmatpush.bf16.msra.mxu0 %v990
        %1249 = vmatpush.bf16.msra.mxu0 %v988
        %1250 = vmatpush.bf16.msra.mxu0 %v986
        %1251 = vmatmul.bf16.gmra.mxu0 %v707
        %v1252 = vpop.f32.mrf.mxu0
        %v1253 = vadd.f32 %v1234, %v1252
        %v1254 = vpop.f32.mrf.mxu0
        %v1255 = vadd.f32 %v1236, %v1254
        %1256 = vmatmul.bf16.gmra.mxu0 %v725
        %v1257 = vpop.f32.mrf.mxu0
        %v1258 = vadd.f32 %v1239, %v1257
        %v1259 = vpop.f32.mrf.mxu0
        %v1260 = vadd.f32 %v1241, %v1259
        %1261 = vdwg.mxu0
        %1262 = vmatpush.bf16.msra.mxu0 %v1016
        %1263 = vmatpush.bf16.msra.mxu0 %v1014
        %1264 = vmatpush.bf16.msra.mxu0 %v1012
        %1265 = vmatpush.bf16.msra.mxu0 %v1010
        %1266 = vmatpush.bf16.msra.mxu0 %v1008
        %1267 = vmatpush.bf16.msra.mxu0 %v1006
        %1268 = vmatpush.bf16.msra.mxu0 %v1004
        %1269 = vmatpush.bf16.msra.mxu0 %v1002
        %1270 = vmatmul.bf16.gmra.mxu0 %v711
        %v1271 = vpop.f32.mrf.mxu0
        %v1272 = vadd.f32 %v1253, %v1271
        %v1273 = vpop.f32.mrf.mxu0
        %v1274 = vadd.f32 %v1255, %v1273
        %1275 = vmatmul.bf16.gmra.mxu0 %v726
        %v1276 = vpop.f32.mrf.mxu0
        %v1277 = vadd.f32 %v1258, %v1276
        %v1278 = vpop.f32.mrf.mxu0
        %v1279 = vadd.f32 %v1260, %v1278
        %1280 = vdwg.mxu0
        %1281 = vmatpush.bf16.msra.mxu0 %v1032
        %1282 = vmatpush.bf16.msra.mxu0 %v1030
        %1283 = vmatpush.bf16.msra.mxu0 %v1028
        %1284 = vmatpush.bf16.msra.mxu0 %v1026
        %1285 = vmatpush.bf16.msra.mxu0 %v1024
        %1286 = vmatpush.bf16.msra.mxu0 %v1022
        %1287 = vmatpush.bf16.msra.mxu0 %v1020
        %1288 = vmatpush.bf16.msra.mxu0 %v1018
        %1289 = vmatmul.bf16.gmra.mxu0 %v715
        %v1290 = vpop.f32.mrf.mxu0
        %v1291 = vadd.f32 %v1272, %v1290
        %v1292 = vpop.f32.mrf.mxu0
        %v1293 = vadd.f32 %v1274, %v1292
        %1294 = vmatmul.bf16.gmra.mxu0 %v727
        %v1295 = vpop.f32.mrf.mxu0
        %v1296 = vadd.f32 %v1277, %v1295
        %v1297 = vpop.f32.mrf.mxu0
        %v1298 = vadd.f32 %v1279, %v1297
        %1299 = vdwg.mxu0
        %1300 = vmatpush.bf16.msra.mxu0 %v1048
        %1301 = vmatpush.bf16.msra.mxu0 %v1046
        %1302 = vmatpush.bf16.msra.mxu0 %v1044
        %1303 = vmatpush.bf16.msra.mxu0 %v1042
        %1304 = vmatpush.bf16.msra.mxu0 %v1040
        %1305 = vmatpush.bf16.msra.mxu0 %v1038
        %1306 = vmatpush.bf16.msra.mxu0 %v1036
        %1307 = vmatpush.bf16.msra.mxu0 %v1034
        %1308 = vmatmul.bf16.gmra.mxu0 %v719
        %v1309 = vpop.f32.mrf.mxu0
        %v1310 = vadd.f32 %v1291, %v1309
        %v1311 = vpop.f32.mrf.mxu0
        %v1312 = vadd.f32 %v1293, %v1311
        %1313 = vmatmul.bf16.gmra.mxu0 %v728
        %v1314 = vpop.f32.mrf.mxu0
        %v1315 = vadd.f32 %v1296, %v1314
        %v1316 = vpop.f32.mrf.mxu0
        %v1317 = vadd.f32 %v1298, %v1316
        %1318 = vdwg.mxu0
        %vm1323 = vcmask 1040384
        %v1324 = vrot.slane %v1215, 7
        %v1325 = vrot.slane %v1217, 7
        %v1326 = vsel %vm1323, %v1324, %v1325
        %v1327 = vrot.slane %v1310, 7
        %v1328 = vrot.slane %v1312, 7
        %v1329 = vsel %vm1323, %v1327, %v1328
        %v1332 = vmax.f32 %v1215, %v1326
        %v1333 = vmax.f32 %v1310, %v1329
        %v1338 = vrot.slane %v1220, 7
        %v1339 = vrot.slane %v1315, 7
        %v1340 = vrot.slane %v1222, 7
        %v1341 = vsel %vm1323, %v1338, %v1340
        %v1342 = vrot.slane %v1317, 7
        %v1343 = vsel %vm1323, %v1339, %v1342
        %v1348 = vmax.f32 %v1217, %v1338
        %v1349 = vmax.f32 %v1312, %v1339
        %v1350 = vmax.f32 %v1220, %v1341
        %v1351 = vmax.f32 %v1315, %v1343
        %v1352 = vld [vmem:[%s2] sm:$0x1]
        %v1353 = vmax.f32 %v1332, %v1333
        %v1355 = vperm.slane %v1352, 0
        %v1357 = vadd.f32 %v1353, %v1355
        %v1358 = vmax.f32 %v1357, 0.0
        %v1359 = vmax.f32 %v1348, %v1349
        %v1360 = vmax.f32 %v1350, %v1351
        %v1361 = vadd.f32 %v1359, %v1355
        %v1362 = vadd.f32 %v1360, %v1355
        %v1363 = vmax.f32 %v1361, 0.0
        %v1364 = vmax.f32 %v1362, 0.0
        %v1365 = vpack.c.bf16 %v1358, %v1358
        %v1366 = vpack.c.bf16 %v1363, %v1363
        %v1367 = vpack.c.bf16 %v1364, %v1364
        %v1370 = vunpack.c.l.b16 %v1366
        %v1371 = vunpack.c.l.b16 %v1367
        %v1372 = vpack.c.b16 %v1371, %v1370
        %v1373 = vrot.slane %v1372, 3
        %v1376 = vunpack.c.l.b16 %v1365
        %v1377 = vpack.c.b16 %v1376, %v1376
        %v1379 = vshrl.u32 %v1377, 16
        %v1381 = vshll.u32 %v1377, 16
        %v1383 = vrot.slane %v1381, 1
        %v1384 = vor.u32 %v1379, %v1383
        %v1387 = vshrl.u32 %v1372, 16
        %v1389 = vrot.slane %v1387, 3
        %v1390 = vshll.u32 %v1372, 16
        %v1392 = vrot.slane %v1390, 4
        %v1393 = vor.u32 %v1389, %v1392
        %v1395 = vrot.slane %v1377, 1
        %v1397 = vrot.slane %v1379, 5
        %v1398 = vrot.slane %v1381, 6
        %v1399 = vor.u32 %v1397, %v1398
        %v1400 = vrot.slane %v1390, 1
        %v1401 = vor.u32 %v1387, %v1400
        %v1402 = vrot.slane %v1377, 6
        %v1403 = vpack.c.b16 %v1371, %v1371
        %v1404 = vrot.slane %v1403, 5
        %v1406 = vshrl.u32 %v1399, 16
        %v1408 = vshll.u32 %v1399, 16
        %v1410 = vrot.slane %v1408, 1
        %v1411 = vor.u32 %v1406, %v1410
        %v1413 = vshrl.u32 %v1401, 16
        %v1415 = vshll.u32 %v1401, 16
        %v1417 = vrot.slane %v1415, 1
        %v1418 = vor.u32 %v1413, %v1417
        %v1420 = vshrl.u32 %v1402, 16
        %v1422 = vshll.u32 %v1402, 16
        %v1424 = vrot.slane %v1422, 1
        %v1425 = vor.u32 %v1420, %v1424
        %v1427 = vshrl.u32 %v1404, 16
        %v1429 = vshll.u32 %v1404, 16
        %v1431 = vrot.slane %v1429, 1
        %v1432 = vor.u32 %v1427, %v1431
        %v1438 = vsel %vm723, %v1365, %v1401
        %v1439 = vsel %vm723, %v1373, %v1411
        %v1440 = vsel %vm723, %v1384, %v1418
        %v1441 = vsel %vm723, %v1393, %v1425
        %v1442 = vsel %vm723, %v1395, %v1432
        %v1523 = vunpack.c.l.b16 %v486
        %v1524 = vunpack.c.h.b16 %v486
        %v1525 = vunpack.c.l.b16 %v487
        %v1526 = vunpack.c.h.b16 %v487
        %v1527 = vunpack.c.l.b16 %v488
        %v1528 = vunpack.c.h.b16 %v488
        %v1529 = vunpack.c.l.b16 %v489
        %v1530 = vunpack.c.h.b16 %v489
        %v1531 = vunpack.c.l.b16 %v490
        %v1532 = vunpack.c.h.b16 %v490
        %v1533 = vunpack.c.l.b16 %v491
        %v1534 = vunpack.c.h.b16 %v491
        %v1535 = vunpack.c.l.b16 %v492
        %v1536 = vunpack.c.h.b16 %v492
        %v1537 = vunpack.c.l.b16 %v493
        %v1538 = vunpack.c.h.b16 %v493
        %v1539 = vunpack.c.l.b16 %v494
        %v1540 = vunpack.c.h.b16 %v494
        %v1541 = vunpack.c.l.b16 %v495
        %v1542 = vunpack.c.h.b16 %v495
        %v1543 = vunpack.c.l.b16 %v496
        %v1544 = vunpack.c.h.b16 %v496
        %v1545 = vunpack.c.l.b16 %v497
        %v1546 = vunpack.c.h.b16 %v497
        %v1547 = vunpack.c.l.b16 %v498
        %v1548 = vunpack.c.h.b16 %v498
        %v1549 = vunpack.c.l.b16 %v499
        %v1550 = vunpack.c.h.b16 %v499
        %v1551 = vunpack.c.l.b16 %v500
        %v1552 = vunpack.c.h.b16 %v500
        %v1553 = vunpack.c.l.b16 %v501
        %v1554 = vunpack.c.h.b16 %v501
        %v1555 = vunpack.c.l.b16 %v502
        %v1556 = vunpack.c.h.b16 %v502
        %v1557 = vunpack.c.l.b16 %v503
        %v1558 = vunpack.c.h.b16 %v503
        %v1559 = vunpack.c.l.b16 %v504
        %v1560 = vunpack.c.h.b16 %v504
        %v1561 = vunpack.c.l.b16 %v505
        %v1562 = vunpack.c.h.b16 %v505
        %v1563 = vunpack.c.l.b16 %v506
        %v1564 = vunpack.c.h.b16 %v506
        %v1565 = vunpack.c.l.b16 %v507
        %v1566 = vunpack.c.h.b16 %v507
        %v1567 = vunpack.c.l.b16 %v508
        %v1568 = vunpack.c.h.b16 %v508
        %v1569 = vunpack.c.l.b16 %v509
        %v1570 = vunpack.c.h.b16 %v509
        %v1571 = vunpack.c.l.b16 %v510
        %v1572 = vunpack.c.h.b16 %v510
        %v1573 = vunpack.c.l.b16 %v511
        %v1574 = vunpack.c.h.b16 %v511
        %v1575 = vunpack.c.l.b16 %v512
        %v1576 = vunpack.c.h.b16 %v512
        %v1577 = vunpack.c.l.b16 %v513
        %v1578 = vunpack.c.h.b16 %v513
        %v1579 = vunpack.c.l.b16 %v514
        %v1580 = vunpack.c.h.b16 %v514
        %v1581 = vunpack.c.l.b16 %v515
        %v1582 = vunpack.c.h.b16 %v515
        %v1583 = vunpack.c.l.b16 %v516
        %v1584 = vunpack.c.h.b16 %v516
        %v1585 = vunpack.c.l.b16 %v517
        %v1586 = vunpack.c.h.b16 %v517
        %v1587 = vunpack.c.l.b16 %v518
        %v1588 = vunpack.c.h.b16 %v518
        %v1589 = vunpack.c.l.b16 %v519
        %v1590 = vunpack.c.h.b16 %v519
        %v1591 = vunpack.c.l.b16 %v520
        %v1592 = vunpack.c.h.b16 %v520
        %v1593 = vunpack.c.l.b16 %v521
        %v1594 = vunpack.c.h.b16 %v521
        %v1595 = vunpack.c.l.b16 %v522
        %v1596 = vunpack.c.h.b16 %v522
        %v1597 = vunpack.c.l.b16 %v523
        %v1598 = vunpack.c.h.b16 %v523
        %v1599 = vunpack.c.l.b16 %v524
        %v1600 = vunpack.c.h.b16 %v524
        %v1601 = vunpack.c.l.b16 %v525
        %v1602 = vunpack.c.h.b16 %v525
        %v1603 = vunpack.c.l.b16 %v526
        %v1604 = vunpack.c.h.b16 %v526
        %v1605 = vunpack.c.l.b16 %v527
        %v1606 = vunpack.c.h.b16 %v527
        %v1607 = vunpack.c.l.b16 %v528
        %v1608 = vunpack.c.h.b16 %v528
        %v1609 = vunpack.c.l.b16 %v529
        %v1610 = vunpack.c.h.b16 %v529
        %v1611 = vunpack.c.l.b16 %v530
        %v1612 = vunpack.c.h.b16 %v530
        %v1613 = vunpack.c.l.b16 %v531
        %v1614 = vunpack.c.h.b16 %v531
        %v1615 = vunpack.c.l.b16 %v532
        %v1616 = vunpack.c.h.b16 %v532
        %v1617 = vunpack.c.l.b16 %v533
        %v1618 = vunpack.c.h.b16 %v533
        %v1619 = vunpack.c.l.b16 %v534
        %v1620 = vunpack.c.h.b16 %v534
        %v1621 = vunpack.c.l.b16 %v535
        %v1622 = vunpack.c.h.b16 %v535
        %v1623 = vunpack.c.l.b16 %v536
        %v1624 = vunpack.c.h.b16 %v536
        %v1625 = vunpack.c.l.b16 %v537
        %v1626 = vunpack.c.h.b16 %v537
        %v1627 = vunpack.c.l.b16 %v538
        %v1628 = vunpack.c.h.b16 %v538
        %v1629 = vunpack.c.l.b16 %v539
        %v1630 = vunpack.c.h.b16 %v539
        %v1631 = vunpack.c.l.b16 %v540
        %v1632 = vunpack.c.h.b16 %v540
        %v1633 = vunpack.c.l.b16 %v541
        %v1634 = vunpack.c.h.b16 %v541
        %v1635 = vunpack.c.l.b16 %v542
        %v1636 = vunpack.c.h.b16 %v542
        %v1637 = vunpack.c.l.b16 %v543
        %v1638 = vunpack.c.h.b16 %v543
        %v1639 = vunpack.c.l.b16 %v544
        %v1640 = vunpack.c.h.b16 %v544
        %v1641 = vunpack.c.l.b16 %v545
        %v1642 = vunpack.c.h.b16 %v545
        %v1643 = vunpack.c.l.b16 %v546
        %v1644 = vunpack.c.h.b16 %v546
        %v1645 = vunpack.c.l.b16 %v547
        %v1646 = vunpack.c.h.b16 %v547
        %v1647 = vunpack.c.l.b16 %v548
        %v1648 = vunpack.c.h.b16 %v548
        %v1649 = vunpack.c.l.b16 %v549
        %v1650 = vunpack.c.h.b16 %v549
        %v1651 = vunpack.c.l.b16 %v550
        %v1652 = vunpack.c.h.b16 %v550
        %v1653 = vunpack.c.l.b16 %v551
        %v1654 = vunpack.c.h.b16 %v551
        %v1655 = vunpack.c.l.b16 %v552
        %v1656 = vunpack.c.h.b16 %v552
        %v1657 = vunpack.c.l.b16 %v553
        %v1658 = vunpack.c.h.b16 %v553
        %v1659 = vunpack.c.l.b16 %v554
        %v1660 = vunpack.c.h.b16 %v554
        %v1661 = vunpack.c.l.b16 %v555
        %v1662 = vunpack.c.h.b16 %v555
        %v1663 = vunpack.c.l.b16 %v556
        %v1664 = vunpack.c.h.b16 %v556
        %v1665 = vunpack.c.l.b16 %v557
        %v1666 = vunpack.c.h.b16 %v557
        %v1667 = vunpack.c.l.b16 %v558
        %v1668 = vunpack.c.h.b16 %v558
        %v1669 = vunpack.c.l.b16 %v559
        %v1670 = vunpack.c.h.b16 %v559
        %v1671 = vunpack.c.l.b16 %v560
        %v1672 = vunpack.c.h.b16 %v560
        %v1673 = vunpack.c.l.b16 %v561
        %v1674 = vunpack.c.h.b16 %v561
        %v1675 = vunpack.c.l.b16 %v562
        %v1676 = vunpack.c.h.b16 %v562
        %v1677 = vunpack.c.l.b16 %v563
        %v1678 = vunpack.c.h.b16 %v563
        %v1679 = vunpack.c.l.b16 %v564
        %v1680 = vunpack.c.h.b16 %v564
        %v1681 = vunpack.c.l.b16 %v565
        %v1682 = vunpack.c.h.b16 %v565
        %v1683 = vpack.c.b16 %v1525, %v1523
        %v1684 = vpack.c.b16 %v1526, %v1524
        %v1685 = vpack.c.b16 %v1529, %v1527
        %v1686 = vpack.c.b16 %v1530, %v1528
        %v1687 = vpack.c.b16 %v1533, %v1531
        %v1688 = vpack.c.b16 %v1534, %v1532
        %v1689 = vpack.c.b16 %v1537, %v1535
        %v1690 = vpack.c.b16 %v1538, %v1536
        %v1691 = vpack.c.b16 %v1541, %v1539
        %v1692 = vpack.c.b16 %v1542, %v1540
        %v1693 = vpack.c.b16 %v1545, %v1543
        %v1694 = vpack.c.b16 %v1546, %v1544
        %v1695 = vpack.c.b16 %v1549, %v1547
        %v1696 = vpack.c.b16 %v1550, %v1548
        %v1697 = vpack.c.b16 %v1553, %v1551
        %v1698 = vpack.c.b16 %v1554, %v1552
        %v1699 = vpack.c.b16 %v1557, %v1555
        %v1700 = vpack.c.b16 %v1558, %v1556
        %v1701 = vpack.c.b16 %v1561, %v1559
        %v1702 = vpack.c.b16 %v1562, %v1560
        %v1703 = vpack.c.b16 %v1565, %v1563
        %v1704 = vpack.c.b16 %v1566, %v1564
        %v1705 = vpack.c.b16 %v1569, %v1567
        %v1706 = vpack.c.b16 %v1570, %v1568
        %v1707 = vpack.c.b16 %v1573, %v1571
        %v1708 = vpack.c.b16 %v1574, %v1572
        %v1709 = vpack.c.b16 %v1577, %v1575
        %v1710 = vpack.c.b16 %v1578, %v1576
        %v1711 = vpack.c.b16 %v1581, %v1579
        %v1712 = vpack.c.b16 %v1582, %v1580
        %v1713 = vpack.c.b16 %v1585, %v1583
        %v1714 = vpack.c.b16 %v1586, %v1584
        %v1715 = vpack.c.b16 %v1589, %v1587
        %v1716 = vpack.c.b16 %v1590, %v1588
        %v1717 = vpack.c.b16 %v1593, %v1591
        %v1718 = vpack.c.b16 %v1594, %v1592
        %v1719 = vpack.c.b16 %v1597, %v1595
        %v1720 = vpack.c.b16 %v1598, %v1596
        %v1721 = vpack.c.b16 %v1601, %v1599
        %v1722 = vpack.c.b16 %v1602, %v1600
        %v1723 = vpack.c.b16 %v1605, %v1603
        %v1724 = vpack.c.b16 %v1606, %v1604
        %v1725 = vpack.c.b16 %v1609, %v1607
        %v1726 = vpack.c.b16 %v1610, %v1608
        %v1727 = vpack.c.b16 %v1613, %v1611
        %v1728 = vpack.c.b16 %v1614, %v1612
        %v1729 = vpack.c.b16 %v1617, %v1615
        %v1730 = vpack.c.b16 %v1618, %v1616
        %v1731 = vpack.c.b16 %v1621, %v1619
        %v1732 = vpack.c.b16 %v1622, %v1620
        %v1733 = vpack.c.b16 %v1625, %v1623
        %v1734 = vpack.c.b16 %v1626, %v1624
        %v1735 = vpack.c.b16 %v1629, %v1627
        %v1736 = vpack.c.b16 %v1630, %v1628
        %v1737 = vpack.c.b16 %v1633, %v1631
        %v1738 = vpack.c.b16 %v1634, %v1632
        %v1739 = vpack.c.b16 %v1637, %v1635
        %v1740 = vpack.c.b16 %v1638, %v1636
        %v1741 = vpack.c.b16 %v1641, %v1639
        %v1742 = vpack.c.b16 %v1642, %v1640
        %v1743 = vpack.c.b16 %v1645, %v1643
        %v1744 = vpack.c.b16 %v1646, %v1644
        %v1745 = vpack.c.b16 %v1649, %v1647
        %v1746 = vpack.c.b16 %v1650, %v1648
        %v1747 = vpack.c.b16 %v1653, %v1651
        %v1748 = vpack.c.b16 %v1654, %v1652
        %v1749 = vpack.c.b16 %v1657, %v1655
        %v1750 = vpack.c.b16 %v1658, %v1656
        %v1751 = vpack.c.b16 %v1661, %v1659
        %v1752 = vpack.c.b16 %v1662, %v1660
        %v1753 = vpack.c.b16 %v1665, %v1663
        %v1754 = vpack.c.b16 %v1666, %v1664
        %v1755 = vpack.c.b16 %v1669, %v1667
        %v1756 = vpack.c.b16 %v1670, %v1668
        %v1757 = vpack.c.b16 %v1673, %v1671
        %v1758 = vpack.c.b16 %v1674, %v1672
        %v1759 = vpack.c.b16 %v1677, %v1675
        %v1760 = vpack.c.b16 %v1678, %v1676
        %v1761 = vpack.c.b16 %v1681, %v1679
        %v1762 = vpack.c.b16 %v1682, %v1680
        %1843 = vmatpush.bf16.msra.mxu0 %v1697
        %1844 = vmatpush.bf16.msra.mxu0 %v1695
        %1845 = vmatpush.bf16.msra.mxu0 %v1693
        %1846 = vmatpush.bf16.msra.mxu0 %v1691
        %1847 = vmatpush.bf16.msra.mxu0 %v1689
        %1848 = vmatpush.bf16.msra.mxu0 %v1687
        %1849 = vmatpush.bf16.msra.mxu0 %v1685
        %1850 = vmatpush.bf16.msra.mxu0 %v1683
        %1851 = vmatmul.bf16.gmra.mxu0 %v1438
        %v1852 = vpop.f32.mrf.mxu0
        %v1853 = vadd.f32 0.0, %v1852
        %v1854 = vpop.f32.mrf.mxu0
        %v1855 = vadd.f32 0.0, %v1854
        %1856 = vdwg.mxu0
        %1857 = vmatpush.bf16.msra.mxu0 %v1713
        %1858 = vmatpush.bf16.msra.mxu0 %v1711
        %1859 = vmatpush.bf16.msra.mxu0 %v1709
        %1860 = vmatpush.bf16.msra.mxu0 %v1707
        %1861 = vmatpush.bf16.msra.mxu0 %v1705
        %1862 = vmatpush.bf16.msra.mxu0 %v1703
        %1863 = vmatpush.bf16.msra.mxu0 %v1701
        %1864 = vmatpush.bf16.msra.mxu0 %v1699
        %1865 = vmatmul.bf16.gmra.mxu0 %v1439
        %v1866 = vpop.f32.mrf.mxu0
        %v1867 = vadd.f32 %v1853, %v1866
        %v1868 = vpop.f32.mrf.mxu0
        %v1869 = vadd.f32 %v1855, %v1868
        %1870 = vdwg.mxu0
        %1871 = vmatpush.bf16.msra.mxu0 %v1729
        %1872 = vmatpush.bf16.msra.mxu0 %v1727
        %1873 = vmatpush.bf16.msra.mxu0 %v1725
        %1874 = vmatpush.bf16.msra.mxu0 %v1723
        %1875 = vmatpush.bf16.msra.mxu0 %v1721
        %1876 = vmatpush.bf16.msra.mxu0 %v1719
        %1877 = vmatpush.bf16.msra.mxu0 %v1717
        %1878 = vmatpush.bf16.msra.mxu0 %v1715
        %1879 = vmatmul.bf16.gmra.mxu0 %v1440
        %v1880 = vpop.f32.mrf.mxu0
        %v1881 = vadd.f32 %v1867, %v1880
        %v1882 = vpop.f32.mrf.mxu0
        %v1883 = vadd.f32 %v1869, %v1882
        %1884 = vdwg.mxu0
        %1885 = vmatpush.bf16.msra.mxu0 %v1745
        %1886 = vmatpush.bf16.msra.mxu0 %v1743
        %1887 = vmatpush.bf16.msra.mxu0 %v1741
        %1888 = vmatpush.bf16.msra.mxu0 %v1739
        %1889 = vmatpush.bf16.msra.mxu0 %v1737
        %1890 = vmatpush.bf16.msra.mxu0 %v1735
        %1891 = vmatpush.bf16.msra.mxu0 %v1733
        %1892 = vmatpush.bf16.msra.mxu0 %v1731
        %1893 = vmatmul.bf16.gmra.mxu0 %v1441
        %v1894 = vpop.f32.mrf.mxu0
        %v1895 = vadd.f32 %v1881, %v1894
        %v1896 = vpop.f32.mrf.mxu0
        %v1897 = vadd.f32 %v1883, %v1896
        %1898 = vdwg.mxu0
        %1899 = vmatpush.bf16.msra.mxu0 %v1761
        %1900 = vmatpush.bf16.msra.mxu0 %v1759
        %1901 = vmatpush.bf16.msra.mxu0 %v1757
        %1902 = vmatpush.bf16.msra.mxu0 %v1755
        %1903 = vmatpush.bf16.msra.mxu0 %v1753
        %1904 = vmatpush.bf16.msra.mxu0 %v1751
        %1905 = vmatpush.bf16.msra.mxu0 %v1749
        %1906 = vmatpush.bf16.msra.mxu0 %v1747
        %1907 = vmatmul.bf16.gmra.mxu0 %v1442
        %v1908 = vpop.f32.mrf.mxu0
        %v1909 = vadd.f32 %v1895, %v1908
        %v1910 = vpop.f32.mrf.mxu0
        %v1911 = vadd.f32 %v1897, %v1910
        %1912 = vdwg.mxu0
        %1913 = vmatpush.bf16.msra.mxu0 %v1698
        %1914 = vmatpush.bf16.msra.mxu0 %v1696
        %1915 = vmatpush.bf16.msra.mxu0 %v1694
        %1916 = vmatpush.bf16.msra.mxu0 %v1692
        %1917 = vmatpush.bf16.msra.mxu0 %v1690
        %1918 = vmatpush.bf16.msra.mxu0 %v1688
        %1919 = vmatpush.bf16.msra.mxu0 %v1686
        %1920 = vmatpush.bf16.msra.mxu0 %v1684
        %1921 = vmatmul.bf16.gmra.mxu0 %v1438
        %v1922 = vpop.f32.mrf.mxu0
        %v1923 = vadd.f32 0.0, %v1922
        %v1924 = vpop.f32.mrf.mxu0
        %v1925 = vadd.f32 0.0, %v1924
        %1926 = vdwg.mxu0
        %1927 = vmatpush.bf16.msra.mxu0 %v1714
        %1928 = vmatpush.bf16.msra.mxu0 %v1712
        %1929 = vmatpush.bf16.msra.mxu0 %v1710
        %1930 = vmatpush.bf16.msra.mxu0 %v1708
        %1931 = vmatpush.bf16.msra.mxu0 %v1706
        %1932 = vmatpush.bf16.msra.mxu0 %v1704
        %1933 = vmatpush.bf16.msra.mxu0 %v1702
        %1934 = vmatpush.bf16.msra.mxu0 %v1700
        %1935 = vmatmul.bf16.gmra.mxu0 %v1439
        %v1936 = vpop.f32.mrf.mxu0
        %v1937 = vadd.f32 %v1923, %v1936
        %v1938 = vpop.f32.mrf.mxu0
        %v1939 = vadd.f32 %v1925, %v1938
        %1940 = vdwg.mxu0
        %1941 = vmatpush.bf16.msra.mxu0 %v1730
        %1942 = vmatpush.bf16.msra.mxu0 %v1728
        %1943 = vmatpush.bf16.msra.mxu0 %v1726
        %1944 = vmatpush.bf16.msra.mxu0 %v1724
        %1945 = vmatpush.bf16.msra.mxu0 %v1722
        %1946 = vmatpush.bf16.msra.mxu0 %v1720
        %1947 = vmatpush.bf16.msra.mxu0 %v1718
        %1948 = vmatpush.bf16.msra.mxu0 %v1716
        %1949 = vmatmul.bf16.gmra.mxu0 %v1440
        %v1950 = vpop.f32.mrf.mxu0
        %v1951 = vadd.f32 %v1937, %v1950
        %v1952 = vpop.f32.mrf.mxu0
        %v1953 = vadd.f32 %v1939, %v1952
        %1954 = vdwg.mxu0
        %1955 = vmatpush.bf16.msra.mxu0 %v1746
        %1956 = vmatpush.bf16.msra.mxu0 %v1744
        %1957 = vmatpush.bf16.msra.mxu0 %v1742
        %1958 = vmatpush.bf16.msra.mxu0 %v1740
        %1959 = vmatpush.bf16.msra.mxu0 %v1738
        %1960 = vmatpush.bf16.msra.mxu0 %v1736
        %1961 = vmatpush.bf16.msra.mxu0 %v1734
        %1962 = vmatpush.bf16.msra.mxu0 %v1732
        %1963 = vmatmul.bf16.gmra.mxu0 %v1441
        %v1964 = vpop.f32.mrf.mxu0
        %v1965 = vadd.f32 %v1951, %v1964
        %v1966 = vpop.f32.mrf.mxu0
        %v1967 = vadd.f32 %v1953, %v1966
        %1968 = vdwg.mxu0
        %1969 = vmatpush.bf16.msra.mxu0 %v1762
        %1970 = vmatpush.bf16.msra.mxu0 %v1760
        %1971 = vmatpush.bf16.msra.mxu0 %v1758
        %1972 = vmatpush.bf16.msra.mxu0 %v1756
        %1973 = vmatpush.bf16.msra.mxu0 %v1754
        %1974 = vmatpush.bf16.msra.mxu0 %v1752
        %1975 = vmatpush.bf16.msra.mxu0 %v1750
        %1976 = vmatpush.bf16.msra.mxu0 %v1748
        %1977 = vmatmul.bf16.gmra.mxu0 %v1442
        %v1978 = vpop.f32.mrf.mxu0
        %v1979 = vadd.f32 %v1965, %v1978
        %v1980 = vpop.f32.mrf.mxu0
        %v1981 = vadd.f32 %v1967, %v1980
        %1982 = vdwg.mxu0
        %vm1987 = vcmask 1042432
        %v1988 = vrot.slane %v1909, 5
        %v1989 = vrot.slane %v1911, 5
        %v1990 = vsel %vm1987, %v1988, %v1989
        %v1991 = vrot.slane %v1979, 5
        %v1992 = vrot.slane %v1981, 5
        %v1993 = vsel %vm1987, %v1991, %v1992
        %v1996 = vmax.f32 %v1909, %v1990
        %v1997 = vmax.f32 %v1979, %v1993
        %v1998 = vld [vmem:[%s4] sm:$0x1]
        %v1999 = vmax.f32 %v1996, %v1997
        %v2001 = vperm.slane %v1998, 0
        %v2003 = vadd.f32 %v1999, %v2001
        %v2004 = vmax.f32 %v2003, 0.0
        %v2005 = vpack.c.bf16 %v2004, %v2004
        %v2007 = vunpack.c.l.b16 %v2005
        %v2008 = vpack.c.b16 %v2007, %v2007
        %v2010 = vshrl.u32 %v2008, 16
        %v2013 = vrot.slane %v2008, 1
        %v2015 = vrot.slane %v2010, 1
        %v2017 = vrot.slane %v2008, 2
        %v2019 = vld [vmem:[%s5] sm:$0xf]
        %v2020 = vld [vmem:[%s5 + $0x4] sm:$0xf]
        %v2021 = vld [vmem:[%s5 + $0x8] sm:$0xf]
        %v2022 = vld [vmem:[%s5 + $0xc] sm:$0xf]
        %v2023 = vld [vmem:[%s5 + $0x10] sm:$0xf]
        %v2024 = vld [vmem:[%s5 + $0x14] sm:$0xf]
        %v2025 = vld [vmem:[%s5 + $0x18] sm:$0xf]
        %v2026 = vld [vmem:[%s5 + $0x1c] sm:$0xf]
        %v2027 = vld [vmem:[%s5 + $0x20] sm:$0xf]
        %v2028 = vld [vmem:[%s5 + $0x24] sm:$0xf]
        %v2029 = vld [vmem:[%s5 + $0x28] sm:$0xf]
        %v2030 = vld [vmem:[%s5 + $0x2c] sm:$0xf]
        %v2031 = vld [vmem:[%s5 + $0x30] sm:$0xf]
        %v2032 = vld [vmem:[%s5 + $0x34] sm:$0xf]
        %v2033 = vld [vmem:[%s5 + $0x38] sm:$0xf]
        %v2034 = vld [vmem:[%s5 + $0x3c] sm:$0xf]
        %v2035 = vld [vmem:[%s5 + $0x40] sm:$0xf]
        %v2036 = vld [vmem:[%s5 + $0x44] sm:$0xf]
        %v2037 = vld [vmem:[%s5 + $0x48] sm:$0xf]
        %v2038 = vld [vmem:[%s5 + $0x4c] sm:$0xf]
        %v2039 = vld [vmem:[%s5 + $0x50] sm:$0xf]
        %v2040 = vld [vmem:[%s5 + $0x54] sm:$0xf]
        %v2041 = vld [vmem:[%s5 + $0x58] sm:$0xf]
        %v2042 = vld [vmem:[%s5 + $0x5c] sm:$0xf]
        %v2043 = vld [vmem:[%s5 + $0x60] sm:$0xf]
        %v2044 = vld [vmem:[%s5 + $0x64] sm:$0xf]
        %v2045 = vld [vmem:[%s5 + $0x68] sm:$0xf]
        %v2046 = vld [vmem:[%s5 + $0x6c] sm:$0xf]
        %v2047 = vld [vmem:[%s5 + $0x70] sm:$0xf]
        %v2048 = vld [vmem:[%s5 + $0x74] sm:$0xf]
        %v2049 = vld [vmem:[%s5 + $0x78] sm:$0xf]
        %v2050 = vld [vmem:[%s5 + $0x7c] sm:$0xf]
        %v2051 = vld [vmem:[%s5 + $0x80] sm:$0xf]
        %v2052 = vld [vmem:[%s5 + $0x84] sm:$0xf]
        %v2053 = vld [vmem:[%s5 + $0x88] sm:$0xf]
        %v2054 = vld [vmem:[%s5 + $0x8c] sm:$0xf]
        %v2055 = vld [vmem:[%s5 + $0x90] sm:$0xf]
        %v2056 = vld [vmem:[%s5 + $0x94] sm:$0xf]
        %v2057 = vld [vmem:[%s5 + $0x98] sm:$0xf]
        %v2058 = vld [vmem:[%s5 + $0x9c] sm:$0xf]
        %v2059 = vld [vmem:[%s5 + $0xa0] sm:$0xf]
        %v2060 = vld [vmem:[%s5 + $0xa4] sm:$0xf]
        %v2061 = vld [vmem:[%s5 + $0xa8] sm:$0xf]
        %v2062 = vld [vmem:[%s5 + $0xac] sm:$0xf]
        %v2063 = vld [vmem:[%s5 + $0xb0] sm:$0xf]
        %v2064 = vld [vmem:[%s5 + $0xb4] sm:$0xf]
        %v2065 = vld [vmem:[%s5 + $0xb8] sm:$0xf]
        %v2066 = vld [vmem:[%s5 + $0xbc] sm:$0xf]
        %v2067 = vld [vmem:[%s5 + $0xc0] sm:$0xf]
        %v2068 = vld [vmem:[%s5 + $0xc4] sm:$0xf]
        %v2069 = vld [vmem:[%s5 + $0xc8] sm:$0xf]
        %v2070 = vld [vmem:[%s5 + $0xcc] sm:$0xf]
        %v2071 = vld [vmem:[%s5 + $0xd0] sm:$0xf]
        %v2072 = vld [vmem:[%s5 + $0xd4] sm:$0xf]
        %v2073 = vld [vmem:[%s5 + $0xd8] sm:$0xf]
        %v2074 = vld [vmem:[%s5 + $0xdc] sm:$0xf]
        %v2075 = vld [vmem:[%s5 + $0xe0] sm:$0xf]
        %v2076 = vld [vmem:[%s5 + $0xe4] sm:$0xf]
        %v2077 = vld [vmem:[%s5 + $0xe8] sm:$0xf]
        %v2078 = vld [vmem:[%s5 + $0xec] sm:$0xf]
        %v2079 = vld [vmem:[%s5 + $0xf0] sm:$0xf]
        %v2080 = vld [vmem:[%s5 + $0xf4] sm:$0xf]
        %v2081 = vld [vmem:[%s5 + $0xf8] sm:$0xf]
        %v2082 = vld [vmem:[%s5 + $0xfc] sm:$0xf]
        %v2083 = vld [vmem:[%s5 + $0x100] sm:$0xf]
        %v2084 = vld [vmem:[%s5 + $0x104] sm:$0xf]
        %v2085 = vld [vmem:[%s5 + $0x108] sm:$0xf]
        %v2086 = vld [vmem:[%s5 + $0x10c] sm:$0xf]
        %v2087 = vld [vmem:[%s5 + $0x110] sm:$0xf]
        %v2088 = vld [vmem:[%s5 + $0x114] sm:$0xf]
        %v2089 = vld [vmem:[%s5 + $0x118] sm:$0xf]
        %v2090 = vld [vmem:[%s5 + $0x11c] sm:$0xf]
        %v2091 = vld [vmem:[%s5 + $0x120] sm:$0xf]
        %v2092 = vld [vmem:[%s5 + $0x124] sm:$0xf]
        %v2093 = vld [vmem:[%s5 + $0x128] sm:$0xf]
        %v2094 = vld [vmem:[%s5 + $0x12c] sm:$0xf]
        %v2095 = vld [vmem:[%s5 + $0x130] sm:$0xf]
        %v2096 = vld [vmem:[%s5 + $0x134] sm:$0xf]
        %v2097 = vld [vmem:[%s5 + $0x138] sm:$0xf]
        %v2098 = vld [vmem:[%s5 + $0x13c] sm:$0xf]
        %v2099 = vld [vmem:[%s6] sm:$0x1]
        %v2180 = vunpack.c.l.b16 %v2019
        %v2181 = vunpack.c.l.b16 %v2020
        %v2182 = vunpack.c.l.b16 %v2021
        %v2183 = vunpack.c.l.b16 %v2022
        %v2184 = vunpack.c.l.b16 %v2023
        %v2185 = vunpack.c.l.b16 %v2024
        %v2186 = vunpack.c.l.b16 %v2025
        %v2187 = vunpack.c.l.b16 %v2026
        %v2188 = vunpack.c.l.b16 %v2027
        %v2189 = vunpack.c.l.b16 %v2028
        %v2190 = vunpack.c.l.b16 %v2029
        %v2191 = vunpack.c.l.b16 %v2030
        %v2192 = vunpack.c.l.b16 %v2031
        %v2193 = vunpack.c.l.b16 %v2032
        %v2194 = vunpack.c.l.b16 %v2033
        %v2195 = vunpack.c.l.b16 %v2034
        %v2196 = vunpack.c.l.b16 %v2035
        %v2197 = vunpack.c.l.b16 %v2036
        %v2198 = vunpack.c.l.b16 %v2037
        %v2199 = vunpack.c.l.b16 %v2038
        %v2200 = vunpack.c.l.b16 %v2039
        %v2201 = vunpack.c.l.b16 %v2040
        %v2202 = vunpack.c.l.b16 %v2041
        %v2203 = vunpack.c.l.b16 %v2042
        %v2204 = vunpack.c.l.b16 %v2043
        %v2205 = vunpack.c.l.b16 %v2044
        %v2206 = vunpack.c.l.b16 %v2045
        %v2207 = vunpack.c.l.b16 %v2046
        %v2208 = vunpack.c.l.b16 %v2047
        %v2209 = vunpack.c.l.b16 %v2048
        %v2210 = vunpack.c.l.b16 %v2049
        %v2211 = vunpack.c.l.b16 %v2050
        %v2212 = vunpack.c.l.b16 %v2051
        %v2213 = vunpack.c.l.b16 %v2052
        %v2214 = vunpack.c.l.b16 %v2053
        %v2215 = vunpack.c.l.b16 %v2054
        %v2216 = vunpack.c.l.b16 %v2055
        %v2217 = vunpack.c.l.b16 %v2056
        %v2218 = vunpack.c.l.b16 %v2057
        %v2219 = vunpack.c.l.b16 %v2058
        %v2220 = vunpack.c.l.b16 %v2059
        %v2221 = vunpack.c.l.b16 %v2060
        %v2222 = vunpack.c.l.b16 %v2061
        %v2223 = vunpack.c.l.b16 %v2062
        %v2224 = vunpack.c.l.b16 %v2063
        %v2225 = vunpack.c.l.b16 %v2064
        %v2226 = vunpack.c.l.b16 %v2065
        %v2227 = vunpack.c.l.b16 %v2066
        %v2228 = vunpack.c.l.b16 %v2067
        %v2229 = vunpack.c.l.b16 %v2068
        %v2230 = vunpack.c.l.b16 %v2069
        %v2231 = vunpack.c.l.b16 %v2070
        %v2232 = vunpack.c.l.b16 %v2071
        %v2233 = vunpack.c.l.b16 %v2072
        %v2234 = vunpack.c.l.b16 %v2073
        %v2235 = vunpack.c.l.b16 %v2074
        %v2236 = vunpack.c.l.b16 %v2075
        %v2237 = vunpack.c.l.b16 %v2076
        %v2238 = vunpack.c.l.b16 %v2077
        %v2239 = vunpack.c.l.b16 %v2078
        %v2240 = vunpack.c.l.b16 %v2079
        %v2241 = vunpack.c.l.b16 %v2080
        %v2242 = vunpack.c.l.b16 %v2081
        %v2243 = vunpack.c.l.b16 %v2082
        %v2244 = vunpack.c.l.b16 %v2083
        %v2245 = vunpack.c.l.b16 %v2084
        %v2246 = vunpack.c.l.b16 %v2085
        %v2247 = vunpack.c.l.b16 %v2086
        %v2248 = vunpack.c.l.b16 %v2087
        %v2249 = vunpack.c.l.b16 %v2088
        %v2250 = vunpack.c.l.b16 %v2089
        %v2251 = vunpack.c.l.b16 %v2090
        %v2252 = vunpack.c.l.b16 %v2091
        %v2253 = vunpack.c.l.b16 %v2092
        %v2254 = vunpack.c.l.b16 %v2093
        %v2255 = vunpack.c.l.b16 %v2094
        %v2256 = vunpack.c.l.b16 %v2095
        %v2257 = vunpack.c.l.b16 %v2096
        %v2258 = vunpack.c.l.b16 %v2097
        %v2259 = vunpack.c.l.b16 %v2098
        %v2260 = vpack.c.b16 %v2181, %v2180
        %v2261 = vpack.c.b16 %v2183, %v2182
        %v2262 = vpack.c.b16 %v2185, %v2184
        %v2263 = vpack.c.b16 %v2187, %v2186
        %v2264 = vpack.c.b16 %v2189, %v2188
        %v2265 = vpack.c.b16 %v2191, %v2190
        %v2266 = vpack.c.b16 %v2193, %v2192
        %v2267 = vpack.c.b16 %v2195, %v2194
        %v2268 = vpack.c.b16 %v2197, %v2196
        %v2269 = vpack.c.b16 %v2199, %v2198
        %v2270 = vpack.c.b16 %v2201, %v2200
        %v2271 = vpack.c.b16 %v2203, %v2202
        %v2272 = vpack.c.b16 %v2205, %v2204
        %v2273 = vpack.c.b16 %v2207, %v2206
        %v2274 = vpack.c.b16 %v2209, %v2208
        %v2275 = vpack.c.b16 %v2211, %v2210
        %v2276 = vpack.c.b16 %v2213, %v2212
        %v2277 = vpack.c.b16 %v2215, %v2214
        %v2278 = vpack.c.b16 %v2217, %v2216
        %v2279 = vpack.c.b16 %v2219, %v2218
        %v2280 = vpack.c.b16 %v2221, %v2220
        %v2281 = vpack.c.b16 %v2223, %v2222
        %v2282 = vpack.c.b16 %v2225, %v2224
        %v2283 = vpack.c.b16 %v2227, %v2226
        %v2284 = vpack.c.b16 %v2229, %v2228
        %v2285 = vpack.c.b16 %v2231, %v2230
        %v2286 = vpack.c.b16 %v2233, %v2232
        %v2287 = vpack.c.b16 %v2235, %v2234
        %v2288 = vpack.c.b16 %v2237, %v2236
        %v2289 = vpack.c.b16 %v2239, %v2238
        %v2290 = vpack.c.b16 %v2241, %v2240
        %v2291 = vpack.c.b16 %v2243, %v2242
        %v2292 = vpack.c.b16 %v2245, %v2244
        %v2293 = vpack.c.b16 %v2247, %v2246
        %v2294 = vpack.c.b16 %v2249, %v2248
        %v2295 = vpack.c.b16 %v2251, %v2250
        %v2296 = vpack.c.b16 %v2253, %v2252
        %v2297 = vpack.c.b16 %v2255, %v2254
        %v2298 = vpack.c.b16 %v2257, %v2256
        %v2299 = vpack.c.b16 %v2259, %v2258
        %2340 = vmatpush.bf16.msra.mxu0 %v2267
        %2341 = vmatpush.bf16.msra.mxu0 %v2266
        %2342 = vmatpush.bf16.msra.mxu0 %v2265
        %2343 = vmatpush.bf16.msra.mxu0 %v2264
        %2344 = vmatpush.bf16.msra.mxu0 %v2263
        %2345 = vmatpush.bf16.msra.mxu0 %v2262
        %2346 = vmatpush.bf16.msra.mxu0 %v2261
        %2347 = vmatpush.bf16.msra.mxu0 %v2260
        %2348 = vmatmul.bf16.gmra.mxu0 %v2005
        %v2349 = vpop.f32.mrf.mxu0
        %v2350 = vadd.f32 %v2099, %v2349
        %v2351 = vpop.f32.mrf.mxu0
        %2352 = vdwg.mxu0
        %2353 = vmatpush.bf16.msra.mxu0 %v2275
        %2354 = vmatpush.bf16.msra.mxu0 %v2274
        %2355 = vmatpush.bf16.msra.mxu0 %v2273
        %2356 = vmatpush.bf16.msra.mxu0 %v2272
        %2357 = vmatpush.bf16.msra.mxu0 %v2271
        %2358 = vmatpush.bf16.msra.mxu0 %v2270
        %2359 = vmatpush.bf16.msra.mxu0 %v2269
        %2360 = vmatpush.bf16.msra.mxu0 %v2268
        %2361 = vmatmul.bf16.gmra.mxu0 %v2010
        %v2362 = vpop.f32.mrf.mxu0
        %v2363 = vadd.f32 %v2350, %v2362
        %v2364 = vpop.f32.mrf.mxu0
        %2365 = vdwg.mxu0
        %2366 = vmatpush.bf16.msra.mxu0 %v2283
        %2367 = vmatpush.bf16.msra.mxu0 %v2282
        %2368 = vmatpush.bf16.msra.mxu0 %v2281
        %2369 = vmatpush.bf16.msra.mxu0 %v2280
        %2370 = vmatpush.bf16.msra.mxu0 %v2279
        %2371 = vmatpush.bf16.msra.mxu0 %v2278
        %2372 = vmatpush.bf16.msra.mxu0 %v2277
        %2373 = vmatpush.bf16.msra.mxu0 %v2276
        %2374 = vmatmul.bf16.gmra.mxu0 %v2013
        %v2375 = vpop.f32.mrf.mxu0
        %v2376 = vadd.f32 %v2363, %v2375
        %v2377 = vpop.f32.mrf.mxu0
        %2378 = vdwg.mxu0
        %2379 = vmatpush.bf16.msra.mxu0 %v2291
        %2380 = vmatpush.bf16.msra.mxu0 %v2290
        %2381 = vmatpush.bf16.msra.mxu0 %v2289
        %2382 = vmatpush.bf16.msra.mxu0 %v2288
        %2383 = vmatpush.bf16.msra.mxu0 %v2287
        %2384 = vmatpush.bf16.msra.mxu0 %v2286
        %2385 = vmatpush.bf16.msra.mxu0 %v2285
        %2386 = vmatpush.bf16.msra.mxu0 %v2284
        %2387 = vmatmul.bf16.gmra.mxu0 %v2015
        %v2388 = vpop.f32.mrf.mxu0
        %v2389 = vadd.f32 %v2376, %v2388
        %v2390 = vpop.f32.mrf.mxu0
        %2391 = vdwg.mxu0
        %2392 = vmatpush.bf16.msra.mxu0 %v2299
        %2393 = vmatpush.bf16.msra.mxu0 %v2298
        %2394 = vmatpush.bf16.msra.mxu0 %v2297
        %2395 = vmatpush.bf16.msra.mxu0 %v2296
        %2396 = vmatpush.bf16.msra.mxu0 %v2295
        %2397 = vmatpush.bf16.msra.mxu0 %v2294
        %2398 = vmatpush.bf16.msra.mxu0 %v2293
        %2399 = vmatpush.bf16.msra.mxu0 %v2292
        %2400 = vmatmul.bf16.gmra.mxu0 %v2017
        %v2401 = vpop.f32.mrf.mxu0
        %v2402 = vadd.f32 %v2389, %v2401
        %v2403 = vpop.f32.mrf.mxu0
        %2404 = vdwg.mxu0
        %v2405 = vmax.f32 %v2402, 0.0
        %v2406 = vpack.c.bf16 %v2405, %v2405
        %v2407 = vld [vmem:[%s7] sm:$0xf]
        %v2408 = vld [vmem:[%s7 + $0x4] sm:$0xf]
        %v2409 = vld [vmem:[%s7 + $0x8] sm:$0xf]
        %v2410 = vld [vmem:[%s7 + $0xc] sm:$0xf]
        %v2411 = vld [vmem:[%s7 + $0x10] sm:$0xf]
        %v2412 = vld [vmem:[%s7 + $0x14] sm:$0xf]
        %v2413 = vld [vmem:[%s7 + $0x18] sm:$0xf]
        %v2414 = vld [vmem:[%s7 + $0x1c] sm:$0xf]
        %v2415 = vld [vmem:[%s7 + $0x20] sm:$0xf]
        %v2416 = vld [vmem:[%s7 + $0x24] sm:$0xf]
        %v2417 = vld [vmem:[%s7 + $0x28] sm:$0xf]
        %v2418 = vld [vmem:[%s7 + $0x2c] sm:$0xf]
        %v2419 = vld [vmem:[%s7 + $0x30] sm:$0xf]
        %v2420 = vld [vmem:[%s7 + $0x34] sm:$0xf]
        %v2421 = vld [vmem:[%s7 + $0x38] sm:$0xf]
        %v2422 = vld [vmem:[%s8] sm:$0x1]
        %v2438 = vunpack.c.l.b16 %v2407
        %v2439 = vunpack.c.l.b16 %v2408
        %v2440 = vunpack.c.l.b16 %v2409
        %v2441 = vunpack.c.l.b16 %v2410
        %v2442 = vunpack.c.l.b16 %v2411
        %v2443 = vunpack.c.l.b16 %v2412
        %v2444 = vunpack.c.l.b16 %v2413
        %v2445 = vunpack.c.l.b16 %v2414
        %v2446 = vunpack.c.l.b16 %v2415
        %v2447 = vunpack.c.l.b16 %v2416
        %v2448 = vunpack.c.l.b16 %v2417
        %v2449 = vunpack.c.l.b16 %v2418
        %v2450 = vunpack.c.l.b16 %v2419
        %v2451 = vunpack.c.l.b16 %v2420
        %v2452 = vunpack.c.l.b16 %v2421
        %v2453 = vpack.c.b16 %v2439, %v2438
        %v2454 = vpack.c.b16 %v2441, %v2440
        %v2455 = vpack.c.b16 %v2443, %v2442
        %v2456 = vpack.c.b16 %v2445, %v2444
        %v2457 = vpack.c.b16 %v2447, %v2446
        %v2458 = vpack.c.b16 %v2449, %v2448
        %v2459 = vpack.c.b16 %v2451, %v2450
        %v2460 = vpack.c.b16 %v2452, %v2452
        %vm2468 = vcmask 982016
        %v2470 = vsel %vm2468, %v2406, 0
        %vm2472 = vcmask 1043456
        %v2474 = vsel %vm2472, %v2460, 0
        %2476 = vmatpush.bf16.msra.mxu0 %v2474
        %2477 = vmatpush.bf16.msra.mxu0 %v2459
        %2478 = vmatpush.bf16.msra.mxu0 %v2458
        %2479 = vmatpush.bf16.msra.mxu0 %v2457
        %2480 = vmatpush.bf16.msra.mxu0 %v2456
        %2481 = vmatpush.bf16.msra.mxu0 %v2455
        %2482 = vmatpush.bf16.msra.mxu0 %v2454
        %2483 = vmatpush.bf16.msra.mxu0 %v2453
        %2484 = vmatmul.bf16.gmra.mxu0 %v2470
        %v2485 = vpop.f32.mrf.mxu0
        %v2486 = vadd.f32 %v2422, %v2485
        %v2487 = vpop.f32.mrf.mxu0
        %2488 = vdwg.mxu0
        %v2489 = vmax.f32 %v2486, 0.0
        %v2490 = vpack.c.bf16 %v2489, %v2489
        %v2491 = vld [vmem:[%s9] sm:$0xf]
        %v2492 = vld [vmem:[%s9 + $0x4] sm:$0xf]
        %v2493 = vld [vmem:[%s9 + $0x8] sm:$0xf]
        %v2494 = vld [vmem:[%s9 + $0xc] sm:$0xf]
        %v2495 = vld [vmem:[%s9 + $0x10] sm:$0xf]
        %v2496 = vld [vmem:[%s9 + $0x14] sm:$0xf]
        %v2497 = vld [vmem:[%s9 + $0x18] sm:$0xf]
        %v2498 = vld [vmem:[%s9 + $0x1c] sm:$0xf]
        %v2499 = vld [vmem:[%s9 + $0x20] sm:$0xf]
        %v2500 = vld [vmem:[%s9 + $0x24] sm:$0xf]
        %v2501 = vld [vmem:[%s9 + $0x28] sm:$0x3]
        %v2502 = vld [vmem:[%s10] sm:$0x1]
        %v2514 = vunpack.c.l.b16 %v2491
        %v2515 = vunpack.c.l.b16 %v2492
        %v2516 = vunpack.c.l.b16 %v2493
        %v2517 = vunpack.c.l.b16 %v2494
        %v2518 = vunpack.c.l.b16 %v2495
        %v2519 = vunpack.c.l.b16 %v2496
        %v2520 = vunpack.c.l.b16 %v2497
        %v2521 = vunpack.c.l.b16 %v2498
        %v2522 = vunpack.c.l.b16 %v2499
        %v2523 = vunpack.c.l.b16 %v2500
        %v2524 = vunpack.c.l.b16 %v2501
        %v2525 = vpack.c.b16 %v2515, %v2514
        %v2526 = vpack.c.b16 %v2517, %v2516
        %v2527 = vpack.c.b16 %v2519, %v2518
        %v2528 = vpack.c.b16 %v2521, %v2520
        %v2529 = vpack.c.b16 %v2523, %v2522
        %v2530 = vpack.c.b16 %v2524, %v2524
        %vm2536 = vcmask 687104
        %v2538 = vsel %vm2536, %v2490, 0
        %vm2540 = vcmask 1041408
        %v2542 = vsel %vm2540, %v2530, 0
        %2544 = vmatpush.bf16.msra.mxu0 0
        %2545 = vmatpush.bf16.msra.mxu0 0
        %2546 = vmatpush.bf16.msra.mxu0 %v2542
        %2547 = vmatpush.bf16.msra.mxu0 %v2529
        %2548 = vmatpush.bf16.msra.mxu0 %v2528
        %2549 = vmatpush.bf16.msra.mxu0 %v2527
        %2550 = vmatpush.bf16.msra.mxu0 %v2526
        %2551 = vmatpush.bf16.msra.mxu0 %v2525
        %2552 = vmatmul.bf16.gmra.mxu0 %v2538
        %v2553 = vpop.f32.mrf.mxu0
        %v2554 = vadd.f32 %v2502, %v2553
        %v2555 = vpop.f32.mrf.mxu0
        %2556 = vdwg.mxu0
        %vm2557 = vcmask 73728
        %v2558 = vsel %vm2557, %v2554, -inf
        %2559 = vmax.xlane.f32.xlu0 %v2558
        %v2560 = vpop.xlane.xlu0 %2559
        %v2561 = vsub.f32 %v2554, %v2560
        %v2562 = vmul.f32 %v2561, 1.442695
        %v2563 = vpow.pop %v2562
        %v2564 = vsel %vm2557, %v2563, 0.0
        %2565 = vadd.xlane.f32.xlu0 %v2564
        %v2566 = vpop.xlane.xlu0 %2565
        %v2567 = vlog2.pop %v2566
        %v2568 = vmul.f32 %v2567, 0.6931472
        %v2569 = vsub.f32 %v2561, %v2568
        %2570 = vst.msk [vmem:[%s395] sm:$0x1] %vm2557, %v2569
        %s2571 = sand.u32 %s270, 1
        %s2572 = scalar_lea.sflag [#allocation4], %s2571
        %s2573 = sand.u32 %s270, 1
        %s2574 = scalar_lea.vmem [#allocation5], %s2573
        // Predicated region
        $region69: #{lenet5_forward.1} parent=63 // pred_check
          %p2575 = pneg %p280
        $region70: #{lenet5_forward.1} parent=63 // pred_check_branch
          %2577 = sbr.rel (%p2575) target = $region72
        $region71: #{lenet5_forward.1} parent=63 // pred_region
          %2579 = vsyncadd %s2572, 0
          %s2580 = scalar_lea.hbm %s11, %s26
          %s2582 = sshll.u32 %s2574, 4
          %s2583 = int_to_ptr.vmem [resolvable:$true] %s2582
          %s2584 = sshll.u32 %s2580, 4
          %s2585 = int_to_ptr.hbm [resolvable:$true] %s2584
          %2587 = dma.vmem_to_hbm [thread:$0]  %s2583, 16, %s2585, %s2572
        $region72: #{lenet5_forward.1} parent=63 // pred_fallthru
          _
      $region64: #{lenet5_forward.1} parent=5 // pred_fallthru
        _
      %p2588 = scmp.le.s32.totalorder 2, %s21
      // Predicated region
      $region73: #{lenet5_forward.1} parent=5 // pred_check
        %p2589 = pneg %p2588
      $region74: #{lenet5_forward.1} parent=5 // pred_check_branch
        %2591 = sbr.rel (%p2589) target = $region76
      $region75: #{lenet5_forward.1} parent=5 // pred_region
        %s2592 = ssub.s32 %s21, 2
        // Predicated region
        $region77: #{lenet5_forward.1} parent=75 // pred_check
          %p2593 = pneg %p286
        $region78: #{lenet5_forward.1} parent=75 // pred_check_branch
          %2595 = sbr.rel (%p2593) target = $region80
        $region79: #{lenet5_forward.1} parent=75 // pred_region
          %s2596 = sand.u32 %s271, 1
          %s2597 = scalar_lea.sflag [#allocation4], %s2596
          %s2598 = sand.u32 %s271, 1
          %s2599 = scalar_lea.vmem [#allocation5], %s2598
          %2601 = dma.done %s2597, 16
        $region80: #{lenet5_forward.1} parent=75 // pred_fallthru
          _
      $region76: #{lenet5_forward.1} parent=5 // pred_fallthru
        _
    $region6: #{lenet5_forward.1} parent=1 // loop_footer
      %s25 = sadd.s32 1, %s21
    $region7: #{lenet5_forward.1} parent=1 // loop_footer_branch
      %20 = sbr.rel target = $region3
    $region8: #{lenet5_forward.1} parent=1 // loop_exit
      _
    %2602 = vsyncpa [#allocation3], 1
    %s2603 = scalar_lea.sflag [#allocation3], 1
    %2604 = vsyncpa %s2603, 1
    %2605 = vsyncpa [#allocation4], 1
    %s2606 = scalar_lea.sflag [#allocation4], 1
    %2607 = vsyncpa %s2606, 1

</llo_original>
